<compile_context>
chip_gen: v6e
topology: v6e:2x2x1
jax: 0.10.0
libtpu: 0.0.40
codegen_flags: <defaults>
</compile_context>

<pallas_src>
import jax
import jax.numpy as jnp
from jax.experimental import pallas as pl
from jax.experimental.pallas import tpu as pltpu


# ----------------------------- kernel ---------------------------------------

def dqn_kernel(x_ref, w1_ref, b1_ref, w2_ref, b2_ref, w3_ref, b3_ref, o_ref):
    # Cast x to bf16 in-kernel (avoids a separate HBM pad/cast pass in the wrapper).
    x = x_ref[...].astype(jnp.bfloat16)

    # Layer 1: Linear(in_dim -> hidden) + ReLU  (bf16 MXU inputs, f32 accumulate)
    h1 = jnp.dot(x, w1_ref[...], preferred_element_type=jnp.float32)
    h1 = jnp.maximum(h1 + b1_ref[...], 0.0)

    # Layer 2: Linear(hidden -> hidden) + ReLU
    h2 = jnp.dot(h1.astype(jnp.bfloat16), w2_ref[...],
                 preferred_element_type=jnp.float32)
    h2 = jnp.maximum(h2 + b2_ref[...], 0.0)

    # Layer 3: Linear(hidden -> out_pad), no activation (Q-values).
    q = jnp.dot(h2.astype(jnp.bfloat16), w3_ref[...],
                preferred_element_type=jnp.float32)
    # bf16 store: lane-dense (out_pad = multiple of 128) and half the HBM bytes
    # of the previous f32 store -- the output write was the roofline bottleneck.
    o_ref[...] = (q + b3_ref[...]).astype(o_ref.dtype)


# ----------------------------- params ---------------------------------------

def init_dqn_params(key, in_dim, out_dim, hidden_dim=128):
    """Deterministic init mirroring torch.nn.Linear's U(-1/sqrt(fan_in), +...).
    Weights stored transposed: (in_features, out_features). f32 master copy."""
    def linear(k, fan_in, fan_out):
        kw, kb = jax.random.split(k)
        bound = 1.0 / jnp.sqrt(jnp.float32(fan_in))
        w = jax.random.uniform(kw, (fan_in, fan_out), jnp.float32, -bound, bound)
        b = jax.random.uniform(kb, (1, fan_out), jnp.float32, -bound, bound)
        return w, b

    k1, k2, k3 = jax.random.split(key, 3)
    w1, b1 = linear(k1, in_dim, hidden_dim)
    w2, b2 = linear(k2, hidden_dim, hidden_dim)
    w3, b3 = linear(k3, hidden_dim, out_dim)
    return {"w1": w1, "b1": b1, "w2": w2, "b2": b2, "w3": w3, "b3": b3}


def prepare_params(params):
    """One-time prep: bf16 weights (MXU-native), f32 biases (added post-accumulate),
    final layer zero-padded to a lane-dense multiple of 128 output columns."""
    out_dim = params["w3"].shape[1]
    out_pad = 128 * pl.cdiv(out_dim, 128)
    w3 = jnp.zeros((params["w3"].shape[0], out_pad), jnp.bfloat16)
    w3 = w3.at[:, :out_dim].set(params["w3"].astype(jnp.bfloat16))
    b3 = jnp.zeros((1, out_pad), jnp.float32)
    b3 = b3.at[:, :out_dim].set(params["b3"].astype(jnp.float32))
    return {
        "w1": params["w1"].astype(jnp.bfloat16), "b1": params["b1"].astype(jnp.float32),
        "w2": params["w2"].astype(jnp.bfloat16), "b2": params["b2"].astype(jnp.float32),
        "w3": w3, "b3": b3, "out_dim": out_dim,
    }


# ----------------------------- forward ---------------------------------------

_DEFAULT_TILE_B = 512        # VMEM/overhead-driven (working set ~1.2 KB/row + ~72 KB weights)
_SMALL_BATCH_THRESHOLD = 64  # below this, plain XLA wins (launch/pad overhead dominates)


def _round_up(n, m):
    return ((n + m - 1) // m) * m


def dqn_reference_bf16(x, prep):
    """Plain-XLA path with identical math (bf16 matmul inputs, f32 accumulate).
    Used both as the small-batch fallback and as the precision-matched reference."""
    h = jnp.dot(x.astype(jnp.bfloat16), prep["w1"],
                preferred_element_type=jnp.float32) + prep["b1"]
    h = jnp.maximum(h, 0.0)
    h = jnp.dot(h.astype(jnp.bfloat16), prep["w2"],
                preferred_element_type=jnp.float32) + prep["b2"]
    h = jnp.maximum(h, 0.0)
    q = jnp.dot(h.astype(jnp.bfloat16), prep["w3"],
                preferred_element_type=jnp.float32) + prep["b3"]
    return q[:, :prep["out_dim"]]


def dqn_reference_f32(x, p):
    """Full-f32 reference matching the original torch module's math."""
    h = jnp.maximum(x @ p["w1"] + p["b1"], 0.0)
    h = jnp.maximum(h @ p["w2"] + p["b2"], 0.0)
    return h @ p["w3"] + p["b3"]


def _run_pallas(x_in, prep, tile_b, n_b, b_pad, single_buffer_weights):
    in_dim = x_in.shape[1]
    hidden = prep["w1"].shape[1]
    out_pad = prep["w3"].shape[1]

    if single_buffer_weights:
        # Block index never changes for weights/biases -> one buffer is enough
        # (saves ~72 KB VMEM vs the default double buffer).
        resident = lambda a: pl.BlockSpec(a.shape, lambda b: (0, 0),
                                          pipeline_mode=pl.Buffered(1))
    else:
        resident = lambda a: pl.BlockSpec(a.shape, lambda b: (0, 0))

    w1, b1, w2, b2, w3, b3 = (prep["w1"], prep["b1"], prep["w2"],
                              prep["b2"], prep["w3"], prep["b3"])

    weight_bytes = sum(int(a.size) * a.dtype.itemsize
                       for a in (w1, b1, w2, b2, w3, b3))
    cost = pl.CostEstimate(
        flops=2 * b_pad * (in_dim * hidden + hidden * hidden + hidden * out_pad),
        transcendentals=0,
        bytes_accessed=int(x_in.size) * x_in.dtype.itemsize + weight_bytes
                       + b_pad * out_pad * 2,  # bf16 output
    )

    return pl.pallas_call(
        dqn_kernel,
        out_shape=jax.ShapeDtypeStruct((b_pad, out_pad), jnp.bfloat16),
        grid=(n_b,),
        in_specs=[
            pl.BlockSpec((tile_b, in_dim), lambda b: (b, 0)),  # x: tiled over batch
            resident(w1), resident(b1),
            resident(w2), resident(b2),
            resident(w3), resident(b3),
        ],
        out_specs=pl.BlockSpec((tile_b, out_pad), lambda b: (b, 0)),
        compiler_params=pltpu.CompilerParams(
            dimension_semantics=("parallel",),  # batch tiles shard across v7x's 2 TCs
        ),
        cost_estimate=cost,
    )(x_in, w1, b1, w2, b2, w3, b3)


def dqn_forward(x, prep, tile_b=None):
    """x: (B, in_dim) f32 or bf16. prep: output of prepare_params().
    Returns (B, out_dim) f32."""
    B, _ = x.shape
    out_dim = prep["out_dim"]

    # Small-batch fallback: at B ~ 8 (single env step) the kernel would be pure
    # launch/padding overhead; XLA's fused tiny GEMMs win outright there.
    if B < _SMALL_BATCH_THRESHOLD:
        return dqn_reference_bf16(x, prep).astype(jnp.float32)

    if tile_b is None:
        tile_b = _DEFAULT_TILE_B
    # Cap so there are always >= 2 grid steps (keeps both v7x TensorCores busy);
    # keep the batch tile a multiple of 16 (bf16 output sublane packing).
    tile_b = max(16, min(tile_b, _round_up(pl.cdiv(B, 2), 16)))
    n_b = pl.cdiv(B, tile_b)
    b_pad = n_b * tile_b

    # Only pad the ragged tail (no full pad+cast pass over x); bf16 cast is in-kernel.
    x_in = x if b_pad == B else jnp.pad(x, ((0, b_pad - B), (0, 0)))

    try:
        out = _run_pallas(x_in, prep, tile_b, n_b, b_pad, single_buffer_weights=True)
    except Exception:
        # jax/mosaic version without BlockSpec(pipeline_mode=pl.Buffered(1)) support.
        out = _run_pallas(x_in, prep, tile_b, n_b, b_pad, single_buffer_weights=False)

    # TODO(synk): if the downstream consumer only needs max-Q or Q(s, a), fuse that
    # reduction/gather into the kernel epilogue to shrink output traffic further.
    return out[:B, :out_dim].astype(jnp.float32)


# ----------------------------- demo / checks ---------------------------------

if __name__ == "__main__":
    key = jax.random.PRNGKey(0)
    k_x, k_p, k_s = jax.random.split(key, 3)

    # Module-consistent small shapes; hidden_dim=128 is the module default.
    # batch=300 exercises tail padding and 2 batch tiles (tile_b=160).
    batch, in_dim, out_dim, hidden_dim = 300, 32, 8, 128
    x = jax.random.normal(k_x, (batch, in_dim), jnp.float32)
    params = init_dqn_params(k_p, in_dim, out_dim, hidden_dim)
    prep = prepare_params(params)

    out = dqn_forward(x, prep)          # Pallas kernel path
    jax.block_until_ready(out)
    assert out.shape == (batch, out_dim)
    assert out.dtype == jnp.float32

    # Precision-matched check (bf16 matmuls, f32 accumulate); tolerance covers
    # the bf16 rounding of the kernel's output store.
    ref_bf16 = dqn_reference_bf16(x, prep)
    assert jnp.allclose(out, ref_bf16, atol=2e-2, rtol=2e-2), "mismatch vs bf16 reference"

    # Semantics check vs the original f32 torch-module math (looser: bf16 storage).
    ref_f32 = dqn_reference_f32(x, params)
    assert jnp.allclose(out, ref_f32, atol=6e-2, rtol=6e-2), "mismatch vs f32 reference"

    # Small-batch fallback path (B < 64): plain XLA, same prepared weights.
    x_small = jax.random.normal(k_s, (8, in_dim), jnp.float32)
    out_small = dqn_forward(x_small, prep)
    jax.block_until_ready(out_small)
    assert out_small.shape == (8, out_dim)
    assert jnp.allclose(out_small, dqn_reference_f32(x_small, params),
                        atol=6e-2, rtol=6e-2), "mismatch on small-batch fallback"

    print("KERNEL_OK")
</pallas_src>

<mosaic_0001>
module attributes {stable_mosaic.version = 11 : i64} {
  func.func @dqn_kernel(%arg0: i32, %arg1: memref<160x32xf32, #tpu.memory_space<vmem>>, %arg2: memref<32x128xbf16, #tpu.memory_space<vmem>>, %arg3: memref<1x128xf32, #tpu.memory_space<vmem>>, %arg4: memref<128x128xbf16, #tpu.memory_space<vmem>>, %arg5: memref<1x128xf32, #tpu.memory_space<vmem>>, %arg6: memref<128x128xbf16, #tpu.memory_space<vmem>>, %arg7: memref<1x128xf32, #tpu.memory_space<vmem>>, %arg8: memref<160x128xbf16, #tpu.memory_space<vmem>>) attributes {dimension_semantics = [#tpu.dimension_semantics<parallel>], iteration_bounds = array<i64: 2>, scalar_prefetch = 0 : i64, scratch_operands = 0 : i64, tpu.core_type = #tpu.core_type<tc>, window_params = [{transform_indices = @transform_0, window_bounds = array<i64: 160, 32>}, {pipeline_mode = #tpu.pipeline_mode<synchronous>, transform_indices = @transform_1, window_bounds = array<i64: 32, 128>}, {pipeline_mode = #tpu.pipeline_mode<synchronous>, transform_indices = @transform_2, window_bounds = array<i64: 1, 128>}, {pipeline_mode = #tpu.pipeline_mode<synchronous>, transform_indices = @transform_3, window_bounds = array<i64: 128, 128>}, {pipeline_mode = #tpu.pipeline_mode<synchronous>, transform_indices = @transform_4, window_bounds = array<i64: 1, 128>}, {pipeline_mode = #tpu.pipeline_mode<synchronous>, transform_indices = @transform_5, window_bounds = array<i64: 128, 128>}, {pipeline_mode = #tpu.pipeline_mode<synchronous>, transform_indices = @transform_6, window_bounds = array<i64: 1, 128>}, {transform_indices = @transform_7, window_bounds = array<i64: 160, 128>}]} {
    %c0 = arith.constant 0 : index
    %c0_0 = arith.constant 0 : index
    %0 = vector.load %arg1[%c0, %c0_0] : memref<160x32xf32, #tpu.memory_space<vmem>>, vector<160x32xf32>
    %1 = arith.truncf %0 : vector<160x32xf32> to vector<160x32xbf16>
    %c0_1 = arith.constant 0 : index
    %c0_2 = arith.constant 0 : index
    %2 = vector.load %arg2[%c0_1, %c0_2] : memref<32x128xbf16, #tpu.memory_space<vmem>>, vector<32x128xbf16>
    %cst = arith.constant dense<0.000000e+00> : vector<160x128xf32>
    %3 = tpu.matmul %1, %2, %cst {dimension_numbers = #tpu.dot_dimension_numbers<[1], [0], [0], [1], [0, 0, 1, 1], [], []>} : vector<160x32xbf16>, vector<32x128xbf16>, vector<160x128xf32> -> vector<160x128xf32>
    %c0_3 = arith.constant 0 : index
    %c0_4 = arith.constant 0 : index
    %4 = vector.load %arg3[%c0_3, %c0_4] : memref<1x128xf32, #tpu.memory_space<vmem>>, vector<1x128xf32>
    %5 = vector.broadcast %4 : vector<1x128xf32> to vector<160x128xf32>
    %6 = arith.addf %3, %5 : vector<160x128xf32>
    %cst_5 = arith.constant 0.000000e+00 : f32
    %7 = vector.broadcast %cst_5 : f32 to vector<160x128xf32>
    %8 = arith.maximumf %6, %7 : vector<160x128xf32>
    %9 = arith.truncf %8 : vector<160x128xf32> to vector<160x128xbf16>
    %c0_6 = arith.constant 0 : index
    %c0_7 = arith.constant 0 : index
    %10 = vector.load %arg4[%c0_6, %c0_7] : memref<128x128xbf16, #tpu.memory_space<vmem>>, vector<128x128xbf16>
    %cst_8 = arith.constant dense<0.000000e+00> : vector<160x128xf32>
    %11 = tpu.matmul %9, %10, %cst_8 {dimension_numbers = #tpu.dot_dimension_numbers<[1], [0], [0], [1], [0, 0, 1, 1], [], []>} : vector<160x128xbf16>, vector<128x128xbf16>, vector<160x128xf32> -> vector<160x128xf32>
    %c0_9 = arith.constant 0 : index
    %c0_10 = arith.constant 0 : index
    %12 = vector.load %arg5[%c0_9, %c0_10] : memref<1x128xf32, #tpu.memory_space<vmem>>, vector<1x128xf32>
    %13 = vector.broadcast %12 : vector<1x128xf32> to vector<160x128xf32>
    %14 = arith.addf %11, %13 : vector<160x128xf32>
    %cst_11 = arith.constant 0.000000e+00 : f32
    %15 = vector.broadcast %cst_11 : f32 to vector<160x128xf32>
    %16 = arith.maximumf %14, %15 : vector<160x128xf32>
    %17 = arith.truncf %16 : vector<160x128xf32> to vector<160x128xbf16>
    %c0_12 = arith.constant 0 : index
    %c0_13 = arith.constant 0 : index
    %18 = vector.load %arg6[%c0_12, %c0_13] : memref<128x128xbf16, #tpu.memory_space<vmem>>, vector<128x128xbf16>
    %cst_14 = arith.constant dense<0.000000e+00> : vector<160x128xf32>
    %19 = tpu.matmul %17, %18, %cst_14 {dimension_numbers = #tpu.dot_dimension_numbers<[1], [0], [0], [1], [0, 0, 1, 1], [], []>} : vector<160x128xbf16>, vector<128x128xbf16>, vector<160x128xf32> -> vector<160x128xf32>
    %c0_15 = arith.constant 0 : index
    %c0_16 = arith.constant 0 : index
    %20 = vector.load %arg7[%c0_15, %c0_16] : memref<1x128xf32, #tpu.memory_space<vmem>>, vector<1x128xf32>
    %21 = vector.broadcast %20 : vector<1x128xf32> to vector<160x128xf32>
    %22 = arith.addf %19, %21 : vector<160x128xf32>
    %23 = arith.truncf %22 : vector<160x128xf32> to vector<160x128xbf16>
    %c0_17 = arith.constant 0 : index
    %c0_18 = arith.constant 0 : index
    %24 = vector.load %arg8[%c0_17, %c0_18] : memref<160x128xbf16, #tpu.memory_space<vmem>>, vector<160x128xbf16>
    tpu.vector_store %arg8[%c0_17, %c0_18], %23 {strides = array<i32>} : memref<160x128xbf16, #tpu.memory_space<vmem>>, vector<160x128xbf16>,
    return
  }
  func.func @transform_0(%arg0: i32) -> (i32, i32) {
    %c0_i32 = arith.constant 0 : i32
    %c0_i32_0 = arith.constant 0 : i32
    return %arg0, %c0_i32 : i32, i32
  }
  func.func @transform_1(%arg0: i32) -> (i32, i32) {
    %c0_i32 = arith.constant 0 : i32
    %c0_i32_0 = arith.constant 0 : i32
    %c0_i32_1 = arith.constant 0 : i32
    return %c0_i32, %c0_i32_0 : i32, i32
  }
  func.func @transform_2(%arg0: i32) -> (i32, i32) {
    %c0_i32 = arith.constant 0 : i32
    %c0_i32_0 = arith.constant 0 : i32
    %c0_i32_1 = arith.constant 0 : i32
    return %c0_i32, %c0_i32_0 : i32, i32
  }
  func.func @transform_3(%arg0: i32) -> (i32, i32) {
    %c0_i32 = arith.constant 0 : i32
    %c0_i32_0 = arith.constant 0 : i32
    %c0_i32_1 = arith.constant 0 : i32
    return %c0_i32, %c0_i32_0 : i32, i32
  }
  func.func @transform_4(%arg0: i32) -> (i32, i32) {
    %c0_i32 = arith.constant 0 : i32
    %c0_i32_0 = arith.constant 0 : i32
    %c0_i32_1 = arith.constant 0 : i32
    return %c0_i32, %c0_i32_0 : i32, i32
  }
  func.func @transform_5(%arg0: i32) -> (i32, i32) {
    %c0_i32 = arith.constant 0 : i32
    %c0_i32_0 = arith.constant 0 : i32
    %c0_i32_1 = arith.constant 0 : i32
    return %c0_i32, %c0_i32_0 : i32, i32
  }
  func.func @transform_6(%arg0: i32) -> (i32, i32) {
    %c0_i32 = arith.constant 0 : i32
    %c0_i32_0 = arith.constant 0 : i32
    %c0_i32_1 = arith.constant 0 : i32
    return %c0_i32, %c0_i32_0 : i32, i32
  }
  func.func @transform_7(%arg0: i32) -> (i32, i32) {
    %c0_i32 = arith.constant 0 : i32
    %c0_i32_0 = arith.constant 0 : i32
    return %arg0, %c0_i32 : i32, i32
  }
}

module attributes {stable_mosaic.version = 11 : i64} {
  func.func @dqn_kernel(%arg0: i32, %arg1: memref<160x32xf32, #tpu.memory_space<vmem>>, %arg2: memref<32x128xbf16, #tpu.memory_space<vmem>>, %arg3: memref<1x128xf32, #tpu.memory_space<vmem>>, %arg4: memref<128x128xbf16, #tpu.memory_space<vmem>>, %arg5: memref<1x128xf32, #tpu.memory_space<vmem>>, %arg6: memref<128x128xbf16, #tpu.memory_space<vmem>>, %arg7: memref<1x128xf32, #tpu.memory_space<vmem>>, %arg8: memref<160x128xbf16, #tpu.memory_space<vmem>>) attributes {dimension_semantics = [#tpu.dimension_semantics<parallel>], iteration_bounds = array<i64: 2>, scalar_prefetch = 0 : i64, scratch_operands = 0 : i64, tpu.core_type = #tpu.core_type<tc>, window_params = [{transform_indices = @transform_0, window_bounds = array<i64: 160, 32>}, {pipeline_mode = #tpu.pipeline_mode<synchronous>, transform_indices = @transform_1, window_bounds = array<i64: 32, 128>}, {pipeline_mode = #tpu.pipeline_mode<synchronous>, transform_indices = @transform_2, window_bounds = array<i64: 1, 128>}, {pipeline_mode = #tpu.pipeline_mode<synchronous>, transform_indices = @transform_3, window_bounds = array<i64: 128, 128>}, {pipeline_mode = #tpu.pipeline_mode<synchronous>, transform_indices = @transform_4, window_bounds = array<i64: 1, 128>}, {pipeline_mode = #tpu.pipeline_mode<synchronous>, transform_indices = @transform_5, window_bounds = array<i64: 128, 128>}, {pipeline_mode = #tpu.pipeline_mode<synchronous>, transform_indices = @transform_6, window_bounds = array<i64: 1, 128>}, {transform_indices = @transform_7, window_bounds = array<i64: 160, 128>}]} {
    %c0 = arith.constant 0 : index
    %c0_0 = arith.constant 0 : index
    %0 = vector.load %arg1[%c0, %c0_0] : memref<160x32xf32, #tpu.memory_space<vmem>>, vector<160x32xf32>
    %1 = arith.truncf %0 : vector<160x32xf32> to vector<160x32xbf16>
    %c0_1 = arith.constant 0 : index
    %c0_2 = arith.constant 0 : index
    %2 = vector.load %arg2[%c0_1, %c0_2] : memref<32x128xbf16, #tpu.memory_space<vmem>>, vector<32x128xbf16>
    %cst = arith.constant dense<0.000000e+00> : vector<160x128xf32>
    %3 = tpu.matmul %1, %2, %cst {dimension_numbers = #tpu.dot_dimension_numbers<[1], [0], [0], [1], [0, 0, 1, 1], [], []>} : vector<160x32xbf16>, vector<32x128xbf16>, vector<160x128xf32> -> vector<160x128xf32>
    %c0_3 = arith.constant 0 : index
    %c0_4 = arith.constant 0 : index
    %4 = vector.load %arg3[%c0_3, %c0_4] : memref<1x128xf32, #tpu.memory_space<vmem>>, vector<1x128xf32>
    %5 = vector.broadcast %4 : vector<1x128xf32> to vector<160x128xf32>
    %6 = arith.addf %3, %5 : vector<160x128xf32>
    %cst_5 = arith.constant 0.000000e+00 : f32
    %7 = vector.broadcast %cst_5 : f32 to vector<160x128xf32>
    %8 = arith.maximumf %6, %7 : vector<160x128xf32>
    %9 = arith.truncf %8 : vector<160x128xf32> to vector<160x128xbf16>
    %c0_6 = arith.constant 0 : index
    %c0_7 = arith.constant 0 : index
    %10 = vector.load %arg4[%c0_6, %c0_7] : memref<128x128xbf16, #tpu.memory_space<vmem>>, vector<128x128xbf16>
    %cst_8 = arith.constant dense<0.000000e+00> : vector<160x128xf32>
    %11 = tpu.matmul %9, %10, %cst_8 {dimension_numbers = #tpu.dot_dimension_numbers<[1], [0], [0], [1], [0, 0, 1, 1], [], []>} : vector<160x128xbf16>, vector<128x128xbf16>, vector<160x128xf32> -> vector<160x128xf32>
    %c0_9 = arith.constant 0 : index
    %c0_10 = arith.constant 0 : index
    %12 = vector.load %arg5[%c0_9, %c0_10] : memref<1x128xf32, #tpu.memory_space<vmem>>, vector<1x128xf32>
    %13 = vector.broadcast %12 : vector<1x128xf32> to vector<160x128xf32>
    %14 = arith.addf %11, %13 : vector<160x128xf32>
    %cst_11 = arith.constant 0.000000e+00 : f32
    %15 = vector.broadcast %cst_11 : f32 to vector<160x128xf32>
    %16 = arith.maximumf %14, %15 : vector<160x128xf32>
    %17 = arith.truncf %16 : vector<160x128xf32> to vector<160x128xbf16>
    %c0_12 = arith.constant 0 : index
    %c0_13 = arith.constant 0 : index
    %18 = vector.load %arg6[%c0_12, %c0_13] : memref<128x128xbf16, #tpu.memory_space<vmem>>, vector<128x128xbf16>
    %cst_14 = arith.constant dense<0.000000e+00> : vector<160x128xf32>
    %19 = tpu.matmul %17, %18, %cst_14 {dimension_numbers = #tpu.dot_dimension_numbers<[1], [0], [0], [1], [0, 0, 1, 1], [], []>} : vector<160x128xbf16>, vector<128x128xbf16>, vector<160x128xf32> -> vector<160x128xf32>
    %c0_15 = arith.constant 0 : index
    %c0_16 = arith.constant 0 : index
    %20 = vector.load %arg7[%c0_15, %c0_16] : memref<1x128xf32, #tpu.memory_space<vmem>>, vector<1x128xf32>
    %21 = vector.broadcast %20 : vector<1x128xf32> to vector<160x128xf32>
    %22 = arith.addf %19, %21 : vector<160x128xf32>
    %23 = arith.truncf %22 : vector<160x128xf32> to vector<160x128xbf16>
    %c0_17 = arith.constant 0 : index
    %c0_18 = arith.constant 0 : index
    %24 = vector.load %arg8[%c0_17, %c0_18] : memref<160x128xbf16, #tpu.memory_space<vmem>>, vector<160x128xbf16>
    tpu.vector_store %arg8[%c0_17, %c0_18], %23 {strides = array<i32>} : memref<160x128xbf16, #tpu.memory_space<vmem>>, vector<160x128xbf16>,
    return
  }
  func.func @transform_0(%arg0: i32) -> (i32, i32) {
    %c0_i32 = arith.constant 0 : i32
    %c0_i32_0 = arith.constant 0 : i32
    return %arg0, %c0_i32 : i32, i32
  }
  func.func @transform_1(%arg0: i32) -> (i32, i32) {
    %c0_i32 = arith.constant 0 : i32
    %c0_i32_0 = arith.constant 0 : i32
    %c0_i32_1 = arith.constant 0 : i32
    return %c0_i32, %c0_i32_0 : i32, i32
  }
  func.func @transform_2(%arg0: i32) -> (i32, i32) {
    %c0_i32 = arith.constant 0 : i32
    %c0_i32_0 = arith.constant 0 : i32
    %c0_i32_1 = arith.constant 0 : i32
    return %c0_i32, %c0_i32_0 : i32, i32
  }
  func.func @transform_3(%arg0: i32) -> (i32, i32) {
    %c0_i32 = arith.constant 0 : i32
    %c0_i32_0 = arith.constant 0 : i32
    %c0_i32_1 = arith.constant 0 : i32
    return %c0_i32, %c0_i32_0 : i32, i32
  }
  func.func @transform_4(%arg0: i32) -> (i32, i32) {
    %c0_i32 = arith.constant 0 : i32
    %c0_i32_0 = arith.constant 0 : i32
    %c0_i32_1 = arith.constant 0 : i32
    return %c0_i32, %c0_i32_0 : i32, i32
  }
  func.func @transform_5(%arg0: i32) -> (i32, i32) {
    %c0_i32 = arith.constant 0 : i32
    %c0_i32_0 = arith.constant 0 : i32
    %c0_i32_1 = arith.constant 0 : i32
    return %c0_i32, %c0_i32_0 : i32, i32
  }
  func.func @transform_6(%arg0: i32) -> (i32, i32) {
    %c0_i32 = arith.constant 0 : i32
    %c0_i32_0 = arith.constant 0 : i32
    %c0_i32_1 = arith.constant 0 : i32
    return %c0_i32, %c0_i32_0 : i32, i32
  }
  func.func @transform_7(%arg0: i32) -> (i32, i32) {
    %c0_i32 = arith.constant 0 : i32
    %c0_i32_0 = arith.constant 0 : i32
    return %arg0, %c0_i32 : i32, i32
  }
}

</mosaic_0001>

<llo_original>
// kernel: tpu_custom_call.1
$region0: #{tpu_custom_call.1}
  #allocation0 [shape = 'u32[]', space=smem, size = 0x4, offset = 0x4, fixed_abs, tag = 'smem constant byte address 0x4 - core index']
  #allocation1 [shape = 'u32[144,128]{1,0:T(1,128)}', space=vmem, size = 0x12000, scoped, tag = 'internal scratch']
  %s0 = inlined_call_operand.vmem [shape: f32[320,32], index: 0, kind: input, shape index: {}]
  %s1 = inlined_call_operand.vmem [shape: bf16[32,128], index: 1, kind: input, shape index: {}]
  %s2 = inlined_call_operand.vmem [shape: f32[1,128], index: 2, kind: input, shape index: {}]
  %s3 = inlined_call_operand.vmem [shape: bf16[128,128], index: 3, kind: input, shape index: {}]
  %s4 = inlined_call_operand.vmem [shape: f32[1,128], index: 4, kind: input, shape index: {}]
  %s5 = inlined_call_operand.vmem [shape: bf16[128,128], index: 5, kind: input, shape index: {}]
  %s6 = inlined_call_operand.vmem [shape: f32[1,128], index: 6, kind: input, shape index: {}]
  %s7 = inlined_call_operand.hbm [shape: bf16[320,128], index: 7, kind: output, shape index: {}]
  %s8 = sld [smem:[#allocation0]]
  $region61: #{tpu_custom_call.1} parent=0
    _
  %s10 = ssub.s32 1, %s8
  %s11 = scalar_select 0, %s10, %s8
  $region1: #{tpu_custom_call.1} parent=0
    #allocation2 [shape = 'u8[81920]{0}', space=vmem, size = 0x14000, scoped, tag = 'output window, operand 0']
    #allocation3 [shape = 's32[2]{0}', space=sflag, size = 0x8, scoped, tag = 'scoped memory for tpu_custom_call.1']
    %12 = vsyncpa [#allocation3], 0
    %s13 = scalar_lea.sflag [#allocation3], 1
    %14 = vsyncpa %s13, 0
    loop: start=0, step=1, limit=4
    $region2: #{tpu_custom_call.1} parent=1 // loop_pre_header
      _
    $region3: #{tpu_custom_call.1} parent=1 // loop_header
      %s16 = sphi 0, %s20
      %p17 = scmp.ge.s32.totalorder %s16, 4
      %s26 = sphi 0, %s28
      %s29 = sphi 0, %s26
      %s30 = sphi 0, %s29
      %s46 = sphi 0, %s30
      %s50 = sphi 0, %s50
      %s52 = sphi 0, %s50
      %s53 = sphi 0, %s52
      %s67 = sphi 0, %s53
      %s71 = sphi 0, %s71
      %s73 = sphi 0, %s71
      %s74 = sphi 0, %s73
      %s88 = sphi 0, %s74
      %s92 = sphi 0, %s92
      %s94 = sphi 0, %s92
      %s95 = sphi 0, %s94
      %s109 = sphi 0, %s95
      %s113 = sphi 0, %s113
      %s115 = sphi 0, %s113
      %s116 = sphi 0, %s115
      %s130 = sphi 0, %s116
      %s134 = sphi 0, %s134
      %s136 = sphi 0, %s134
      %s137 = sphi 0, %s136
      %s151 = sphi 0, %s137
      %s155 = sphi 0, %s155
      %s157 = sphi 0, %s155
      %s158 = sphi 0, %s157
      %s172 = sphi 0, %s158
      %s178 = sphi 0, %s180
      %s181 = sphi 0, %s178
      %s182 = sphi 0, %s181
      %s198 = sphi 0, %s182
    $region4: #{tpu_custom_call.1} parent=1 // loop_header_branch
      %19 = sbr.rel (%p17) target = $region8
    $region5: #{tpu_custom_call.1} parent=1 // loop_body
      %s21 = ssub.s32 %s16, 1
      %s22 = ssub.s32 %s16, 2
      %s23 = sadd.s32 %s16, 1
      %s24 = ssub.s32 %s16, %s23
      %p25 = scmp.eq.s32.totalorder %s24, 0
      %s27 = sadd.s32 %s26, 1
      %s28 = scalar_select %p25, %s26, %s27
      %p31 = pneg %p25
      %p32 = scmp.eq.s32.totalorder %s16, 1
      %p33 = por %p31, %p32
      %p34 = scmp.ne.s32.totalorder %s26, %s29
      %p35 = scmp.eq.s32.totalorder %s16, 0
      %p36 = por %p34, %p35
      %p37 = scmp.ne.s32.totalorder %s26, %s29
      %p38 = scmp.eq.s32.totalorder %s21, 1
      %p39 = por %p37, %p38
      %p40 = scmp.ne.s32.totalorder %s29, %s30
      %p41 = scmp.eq.s32.totalorder %s21, 0
      %p42 = por %p40, %p41
      %p43 = scmp.ne.s32.totalorder %s29, %s30
      %p44 = scmp.eq.s32.totalorder %s22, 1
      %p45 = por %p43, %p44
      %p47 = scmp.ne.s32.totalorder %s30, %s46
      %p48 = scmp.eq.s32.totalorder %s22, 0
      %p49 = por %p47, %p48
      %s51 = sadd.s32 %s50, 1
      %p54 = scmp.eq.s32.totalorder %s16, 1
      %p55 = scmp.ne.s32.totalorder %s50, %s52
      %p56 = scmp.eq.s32.totalorder %s16, 0
      %p57 = por %p55, %p56
      %p58 = scmp.ne.s32.totalorder %s50, %s52
      %p59 = scmp.eq.s32.totalorder %s21, 1
      %p60 = por %p58, %p59
      %p61 = scmp.ne.s32.totalorder %s52, %s53
      %p62 = scmp.eq.s32.totalorder %s21, 0
      %p63 = por %p61, %p62
      %p64 = scmp.ne.s32.totalorder %s52, %s53
      %p65 = scmp.eq.s32.totalorder %s22, 1
      %p66 = por %p64, %p65
      %p68 = scmp.ne.s32.totalorder %s53, %s67
      %p69 = scmp.eq.s32.totalorder %s22, 0
      %p70 = por %p68, %p69
      %s72 = sadd.s32 %s71, 1
      %p75 = scmp.eq.s32.totalorder %s16, 1
      %p76 = scmp.ne.s32.totalorder %s71, %s73
      %p77 = scmp.eq.s32.totalorder %s16, 0
      %p78 = por %p76, %p77
      %p79 = scmp.ne.s32.totalorder %s71, %s73
      %p80 = scmp.eq.s32.totalorder %s21, 1
      %p81 = por %p79, %p80
      %p82 = scmp.ne.s32.totalorder %s73, %s74
      %p83 = scmp.eq.s32.totalorder %s21, 0
      %p84 = por %p82, %p83
      %p85 = scmp.ne.s32.totalorder %s73, %s74
      %p86 = scmp.eq.s32.totalorder %s22, 1
      %p87 = por %p85, %p86
      %p89 = scmp.ne.s32.totalorder %s74, %s88
      %p90 = scmp.eq.s32.totalorder %s22, 0
      %p91 = por %p89, %p90
      %s93 = sadd.s32 %s92, 1
      %p96 = scmp.eq.s32.totalorder %s16, 1
      %p97 = scmp.ne.s32.totalorder %s92, %s94
      %p98 = scmp.eq.s32.totalorder %s16, 0
      %p99 = por %p97, %p98
      %p100 = scmp.ne.s32.totalorder %s92, %s94
      %p101 = scmp.eq.s32.totalorder %s21, 1
      %p102 = por %p100, %p101
      %p103 = scmp.ne.s32.totalorder %s94, %s95
      %p104 = scmp.eq.s32.totalorder %s21, 0
      %p105 = por %p103, %p104
      %p106 = scmp.ne.s32.totalorder %s94, %s95
      %p107 = scmp.eq.s32.totalorder %s22, 1
      %p108 = por %p106, %p107
      %p110 = scmp.ne.s32.totalorder %s95, %s109
      %p111 = scmp.eq.s32.totalorder %s22, 0
      %p112 = por %p110, %p111
      %s114 = sadd.s32 %s113, 1
      %p117 = scmp.eq.s32.totalorder %s16, 1
      %p118 = scmp.ne.s32.totalorder %s113, %s115
      %p119 = scmp.eq.s32.totalorder %s16, 0
      %p120 = por %p118, %p119
      %p121 = scmp.ne.s32.totalorder %s113, %s115
      %p122 = scmp.eq.s32.totalorder %s21, 1
      %p123 = por %p121, %p122
      %p124 = scmp.ne.s32.totalorder %s115, %s116
      %p125 = scmp.eq.s32.totalorder %s21, 0
      %p126 = por %p124, %p125
      %p127 = scmp.ne.s32.totalorder %s115, %s116
      %p128 = scmp.eq.s32.totalorder %s22, 1
      %p129 = por %p127, %p128
      %p131 = scmp.ne.s32.totalorder %s116, %s130
      %p132 = scmp.eq.s32.totalorder %s22, 0
      %p133 = por %p131, %p132
      %s135 = sadd.s32 %s134, 1
      %p138 = scmp.eq.s32.totalorder %s16, 1
      %p139 = scmp.ne.s32.totalorder %s134, %s136
      %p140 = scmp.eq.s32.totalorder %s16, 0
      %p141 = por %p139, %p140
      %p142 = scmp.ne.s32.totalorder %s134, %s136
      %p143 = scmp.eq.s32.totalorder %s21, 1
      %p144 = por %p142, %p143
      %p145 = scmp.ne.s32.totalorder %s136, %s137
      %p146 = scmp.eq.s32.totalorder %s21, 0
      %p147 = por %p145, %p146
      %p148 = scmp.ne.s32.totalorder %s136, %s137
      %p149 = scmp.eq.s32.totalorder %s22, 1
      %p150 = por %p148, %p149
      %p152 = scmp.ne.s32.totalorder %s137, %s151
      %p153 = scmp.eq.s32.totalorder %s22, 0
      %p154 = por %p152, %p153
      %s156 = sadd.s32 %s155, 1
      %p159 = scmp.eq.s32.totalorder %s16, 1
      %p160 = scmp.ne.s32.totalorder %s155, %s157
      %p161 = scmp.eq.s32.totalorder %s16, 0
      %p162 = por %p160, %p161
      %p163 = scmp.ne.s32.totalorder %s155, %s157
      %p164 = scmp.eq.s32.totalorder %s21, 1
      %p165 = por %p163, %p164
      %p166 = scmp.ne.s32.totalorder %s157, %s158
      %p167 = scmp.eq.s32.totalorder %s21, 0
      %p168 = por %p166, %p167
      %p169 = scmp.ne.s32.totalorder %s157, %s158
      %p170 = scmp.eq.s32.totalorder %s22, 1
      %p171 = por %p169, %p170
      %p173 = scmp.ne.s32.totalorder %s158, %s172
      %p174 = scmp.eq.s32.totalorder %s22, 0
      %p175 = por %p173, %p174
      %s176 = ssub.s32 %s16, %s23
      %p177 = scmp.eq.s32.totalorder %s176, 0
      %s179 = sadd.s32 %s178, 1
      %s180 = scalar_select %p177, %s178, %s179
      %p183 = pneg %p177
      %p184 = scmp.eq.s32.totalorder %s16, 1
      %p185 = por %p183, %p184
      %p186 = scmp.ne.s32.totalorder %s178, %s181
      %p187 = scmp.eq.s32.totalorder %s16, 0
      %p188 = por %p186, %p187
      %p189 = scmp.ne.s32.totalorder %s178, %s181
      %p190 = scmp.eq.s32.totalorder %s21, 1
      %p191 = por %p189, %p190
      %p192 = scmp.ne.s32.totalorder %s181, %s182
      %p193 = scmp.eq.s32.totalorder %s21, 0
      %p194 = por %p192, %p193
      %p195 = scmp.ne.s32.totalorder %s181, %s182
      %p196 = scmp.eq.s32.totalorder %s22, 1
      %p197 = por %p195, %p196
      %p199 = scmp.ne.s32.totalorder %s182, %s198
      %p200 = scmp.eq.s32.totalorder %s22, 0
      %p201 = por %p199, %p200
      %p202 = scmp.le.s32.totalorder 1, %s16
      %p203 = scmp.lt.s32.totalorder %s16, 3
      %p204 = pnand %p202, %p203
      %p205 = pneg %p204
      // Predicated region
      $region9: #{tpu_custom_call.1} parent=5 // pred_check
        _
      $region10: #{tpu_custom_call.1} parent=5 // pred_check_branch
        %207 = sbr.rel (%p204) target = $region12
      $region11: #{tpu_custom_call.1} parent=5 // pred_region
        %s208 = ssub.s32 %s16, 1
        // Predicated region
        $region13: #{tpu_custom_call.1} parent=11 // pred_check
          %p209 = pneg %p63
        $region14: #{tpu_custom_call.1} parent=11 // pred_check_branch
          %211 = sbr.rel (%p209) target = $region16
        $region15: #{tpu_custom_call.1} parent=11 // pred_region
          _
        $region16: #{tpu_custom_call.1} parent=11 // pred_fallthru
          _
        // Predicated region
        $region17: #{tpu_custom_call.1} parent=11 // pred_check
          %p212 = pneg %p84
        $region18: #{tpu_custom_call.1} parent=11 // pred_check_branch
          %214 = sbr.rel (%p212) target = $region20
        $region19: #{tpu_custom_call.1} parent=11 // pred_region
          _
        $region20: #{tpu_custom_call.1} parent=11 // pred_fallthru
          _
        // Predicated region
        $region21: #{tpu_custom_call.1} parent=11 // pred_check
          %p215 = pneg %p105
        $region22: #{tpu_custom_call.1} parent=11 // pred_check_branch
          %217 = sbr.rel (%p215) target = $region24
        $region23: #{tpu_custom_call.1} parent=11 // pred_region
          _
        $region24: #{tpu_custom_call.1} parent=11 // pred_fallthru
          _
        // Predicated region
        $region25: #{tpu_custom_call.1} parent=11 // pred_check
          %p218 = pneg %p126
        $region26: #{tpu_custom_call.1} parent=11 // pred_check_branch
          %220 = sbr.rel (%p218) target = $region28
        $region27: #{tpu_custom_call.1} parent=11 // pred_region
          _
        $region28: #{tpu_custom_call.1} parent=11 // pred_fallthru
          _
        // Predicated region
        $region29: #{tpu_custom_call.1} parent=11 // pred_check
          %p221 = pneg %p147
        $region30: #{tpu_custom_call.1} parent=11 // pred_check_branch
          %223 = sbr.rel (%p221) target = $region32
        $region31: #{tpu_custom_call.1} parent=11 // pred_region
          _
        $region32: #{tpu_custom_call.1} parent=11 // pred_fallthru
          _
        // Predicated region
        $region33: #{tpu_custom_call.1} parent=11 // pred_check
          %p224 = pneg %p168
        $region34: #{tpu_custom_call.1} parent=11 // pred_check_branch
          %226 = sbr.rel (%p224) target = $region36
        $region35: #{tpu_custom_call.1} parent=11 // pred_region
          _
        $region36: #{tpu_custom_call.1} parent=11 // pred_fallthru
          _
      $region12: #{tpu_custom_call.1} parent=5 // pred_fallthru
        _
      %p227 = scmp.lt.s32.totalorder %s16, 2
      // Predicated region
      $region37: #{tpu_custom_call.1} parent=5 // pred_check
        %p228 = pneg %p227
      $region38: #{tpu_custom_call.1} parent=5 // pred_check_branch
        %230 = sbr.rel (%p228) target = $region40
      $region39: #{tpu_custom_call.1} parent=5 // pred_region
        // Predicated region
        $region41: #{tpu_custom_call.1} parent=39 // pred_check
          %p231 = pneg %p36
        $region42: #{tpu_custom_call.1} parent=39 // pred_check_branch
          %233 = sbr.rel (%p231) target = $region44
        $region43: #{tpu_custom_call.1} parent=39 // pred_region
          %s234 = smul.u32 20, %s16
          %p235 = scmp.lt.s32.totalorder %s234, 39
          %s236 = scalar_select %p235, %s234, 39
          %s237 = smul.addr %s236, 8
          %s238 = scalar_lea.vmem %s0, %s237
          %s239 = smul.u32 20, %s16
        $region44: #{tpu_custom_call.1} parent=39 // pred_fallthru
          _
      $region40: #{tpu_custom_call.1} parent=5 // pred_fallthru
        _
      %p240 = scmp.le.s32.totalorder 1, %s16
      %p241 = scmp.lt.s32.totalorder %s16, 3
      %p242 = pnand %p240, %p241
      %p243 = pneg %p242
      // Predicated region
      $region45: #{tpu_custom_call.1} parent=5 // pred_check
        _
      $region46: #{tpu_custom_call.1} parent=5 // pred_check_branch
        %245 = sbr.rel (%p242) target = $region48
      $region47: #{tpu_custom_call.1} parent=5 // pred_region
        %s246 = ssub.s32 %s16, 1
        %s247 = smul.u32 20, %s21
        %p248 = scmp.lt.s32.totalorder %s247, 39
        %s249 = scalar_select %p248, %s247, 39
        %s250 = smul.addr %s249, 8
        %s251 = scalar_lea.vmem %s0, %s250
        %p252 = pneg %p42
        %p253 = pneg %p39
        %p254 = pneg %p63
        %p255 = pneg %p60
        %p256 = pneg %p84
        %p257 = pneg %p81
        %p258 = pneg %p105
        %p259 = pneg %p102
        %p260 = pneg %p126
        %p261 = pneg %p123
        %p262 = pneg %p147
        %p263 = pneg %p144
        %p264 = pneg %p168
        %p265 = pneg %p165
        %p266 = pneg %p194
        %p267 = pneg %p191
        %s268 = sand.u32 %s181, 1
        %s269 = scalar_lea.sflag [#allocation3], %s268
        %s270 = sand.u32 %s181, 1
        %s271 = smul.addr %s270, 80
        %s272 = scalar_lea.vmem [#allocation2], %s271
        %s273 = smul.u32 20, %s21
        %p274 = scmp.lt.s32.totalorder %s273, 39
        %s275 = scalar_select %p274, %s273, 39
        %s276 = smul.addr %s275, 8
        %s277 = scalar_lea.vmem %s0, %s276
        %s278 = smul.u32 20, %s21
        %s279 = smul.u32 20, %s21
        %v281 = vld [vmem:[%s277] sm:$0xff]
        %v282 = vld [vmem:[%s277 + $0x8] sm:$0xff]
        %v283 = vld [vmem:[%s277 + $0x10] sm:$0xff]
        %v284 = vld [vmem:[%s277 + $0x18] sm:$0xff]
        %v285 = vld [vmem:[%s277 + $0x20] sm:$0xff]
        %v286 = vld [vmem:[%s277 + $0x28] sm:$0xff]
        %v287 = vld [vmem:[%s277 + $0x30] sm:$0xff]
        %v288 = vld [vmem:[%s277 + $0x38] sm:$0xff]
        %v289 = vld [vmem:[%s277 + $0x40] sm:$0xff]
        %v290 = vld [vmem:[%s277 + $0x48] sm:$0xff]
        %v291 = vld [vmem:[%s277 + $0x50] sm:$0xff]
        %v292 = vld [vmem:[%s277 + $0x58] sm:$0xff]
        %v293 = vld [vmem:[%s277 + $0x60] sm:$0xff]
        %v294 = vld [vmem:[%s277 + $0x68] sm:$0xff]
        %v295 = vld [vmem:[%s277 + $0x70] sm:$0xff]
        %v296 = vld [vmem:[%s277 + $0x78] sm:$0xff]
        %v297 = vld [vmem:[%s277 + $0x80] sm:$0xff]
        %v298 = vld [vmem:[%s277 + $0x88] sm:$0xff]
        %v299 = vld [vmem:[%s277 + $0x90] sm:$0xff]
        %v300 = vld [vmem:[%s277 + $0x98] sm:$0xff]
        %v301 = vpack.c.bf16 %v282, %v281
        %v302 = vpack.c.bf16 %v284, %v283
        %v303 = vpack.c.bf16 %v286, %v285
        %v304 = vpack.c.bf16 %v288, %v287
        %v305 = vpack.c.bf16 %v290, %v289
        %v306 = vpack.c.bf16 %v292, %v291
        %v307 = vpack.c.bf16 %v294, %v293
        %v308 = vpack.c.bf16 %v296, %v295
        %v309 = vpack.c.bf16 %v298, %v297
        %v310 = vpack.c.bf16 %v300, %v299
        %v311 = vld [vmem:[%s1] sm:$0xf]
        %v312 = vld [vmem:[%s1 + $0x4] sm:$0xf]
        %v313 = vld [vmem:[%s1 + $0x8] sm:$0xf]
        %v314 = vld [vmem:[%s1 + $0xc] sm:$0xf]
        %v315 = vld [vmem:[%s2] sm:$0x1]
        %v317 = vlaneseq
        %v318 = vshrl.u32 %v317, 7
        %v319 = vsub.s32 0, %v318
        %v320 = vrot.slane %v315, %v319
        %v326 = vunpack.c.l.b16 %v311
        %v327 = vunpack.c.l.b16 %v312
        %v328 = vunpack.c.l.b16 %v313
        %v329 = vunpack.c.l.b16 %v314
        %v330 = vpack.c.b16 %v327, %v326
        %v331 = vpack.c.b16 %v329, %v328
        %vm334 = vcmask 261120
        %v336 = vsel %vm334, %v301, 0
        %v339 = vsel %vm334, %v302, 0
        %v342 = vsel %vm334, %v303, 0
        %v345 = vsel %vm334, %v304, 0
        %v348 = vsel %vm334, %v305, 0
        %v351 = vsel %vm334, %v306, 0
        %v354 = vsel %vm334, %v307, 0
        %v357 = vsel %vm334, %v308, 0
        %v360 = vsel %vm334, %v309, 0
        %v363 = vsel %vm334, %v310, 0
        %365 = vmatprep.subr.bf16.mxu0 0
        %366 = vmatpush1.bf16.msra.mxu0 0
        %367 = vmatprep.subr.bf16.mxu0 0
        %368 = vmatpush1.bf16.msra.mxu0 0
        %369 = vmatprep.subr.bf16.mxu0 0
        %370 = vmatpush1.bf16.msra.mxu0 0
        %371 = vmatprep.subr.bf16.mxu0 0
        %372 = vmatpush1.bf16.msra.mxu0 0
        %373 = vmatprep.subr.bf16.mxu0 0
        %374 = vmatpush1.bf16.msra.mxu0 0
        %375 = vmatprep.subr.bf16.mxu0 0
        %376 = vmatpush1.bf16.msra.mxu0 0
        %377 = vmatprep.subr.bf16.mxu0 0
        %378 = vmatpush1.bf16.msra.mxu0 %v331
        %379 = vmatprep.subr.bf16.mxu0 0
        %380 = vmatpush1.bf16.msra.mxu0 %v330
        %381 = vmatprep.subr.bf16.mxu0 0
        %382 = vmatpush2.bf16.msra.mxu0 0
        %383 = vmatprep.subr.bf16.mxu0 0
        %384 = vmatpush2.bf16.msra.mxu0 0
        %385 = vmatprep.subr.bf16.mxu0 0
        %386 = vmatpush2.bf16.msra.mxu0 0
        %387 = vmatprep.subr.bf16.mxu0 0
        %388 = vmatpush2.bf16.msra.mxu0 0
        %389 = vmatprep.subr.bf16.mxu0 0
        %390 = vmatpush2.bf16.msra.mxu0 0
        %391 = vmatprep.subr.bf16.mxu0 0
        %392 = vmatpush2.bf16.msra.mxu0 0
        %393 = vmatprep.subr.bf16.mxu0 0
        %394 = vmatpush2.bf16.msra.mxu0 0
        %395 = vmatprep.subr.bf16.mxu0 0
        %396 = vmatpush2.bf16.msra.mxu0 0
        %397 = vmatprep.mubr.bf16.mxu0 0
        %398 = vmatmul.mubr.bf16.gmra.mxu0 %v336
        %v399 = vpop.f32.mrf.mxu0
        %v400 = vadd.f32 %v320, %v399
        %v401 = vpop.f32.mrf.mxu0
        %v402 = vpop.f32.mrf.mxu0
        %v403 = vadd.f32 %v320, %v402
        %v404 = vpop.f32.mrf.mxu0
        %405 = vmatprep.mubr.bf16.mxu0 0
        %406 = vmatmul.mubr.bf16.gmra.mxu0 %v339
        %v407 = vpop.f32.mrf.mxu0
        %v408 = vadd.f32 %v320, %v407
        %v409 = vpop.f32.mrf.mxu0
        %v410 = vpop.f32.mrf.mxu0
        %v411 = vadd.f32 %v320, %v410
        %v412 = vpop.f32.mrf.mxu0
        %413 = vmatprep.mubr.bf16.mxu0 0
        %414 = vmatmul.mubr.bf16.gmra.mxu0 %v342
        %v415 = vpop.f32.mrf.mxu0
        %v416 = vadd.f32 %v320, %v415
        %v417 = vpop.f32.mrf.mxu0
        %v418 = vpop.f32.mrf.mxu0
        %v419 = vadd.f32 %v320, %v418
        %v420 = vpop.f32.mrf.mxu0
        %421 = vmatprep.mubr.bf16.mxu0 0
        %422 = vmatmul.mubr.bf16.gmra.mxu0 %v345
        %v423 = vpop.f32.mrf.mxu0
        %v424 = vadd.f32 %v320, %v423
        %v425 = vpop.f32.mrf.mxu0
        %v426 = vpop.f32.mrf.mxu0
        %v427 = vadd.f32 %v320, %v426
        %v428 = vpop.f32.mrf.mxu0
        %429 = vmatprep.mubr.bf16.mxu0 0
        %430 = vmatmul.mubr.bf16.gmra.mxu0 %v348
        %v431 = vpop.f32.mrf.mxu0
        %v432 = vadd.f32 %v320, %v431
        %v433 = vpop.f32.mrf.mxu0
        %v434 = vpop.f32.mrf.mxu0
        %v435 = vadd.f32 %v320, %v434
        %v436 = vpop.f32.mrf.mxu0
        %437 = vmatprep.mubr.bf16.mxu0 0
        %438 = vmatmul.mubr.bf16.gmra.mxu0 %v351
        %v439 = vpop.f32.mrf.mxu0
        %v440 = vadd.f32 %v320, %v439
        %v441 = vpop.f32.mrf.mxu0
        %v442 = vpop.f32.mrf.mxu0
        %v443 = vadd.f32 %v320, %v442
        %v444 = vpop.f32.mrf.mxu0
        %445 = vmatprep.mubr.bf16.mxu0 0
        %446 = vmatmul.mubr.bf16.gmra.mxu0 %v354
        %v447 = vpop.f32.mrf.mxu0
        %v448 = vadd.f32 %v320, %v447
        %v449 = vpop.f32.mrf.mxu0
        %v450 = vpop.f32.mrf.mxu0
        %v451 = vadd.f32 %v320, %v450
        %v452 = vpop.f32.mrf.mxu0
        %453 = vmatprep.mubr.bf16.mxu0 0
        %454 = vmatmul.mubr.bf16.gmra.mxu0 %v357
        %v455 = vpop.f32.mrf.mxu0
        %v456 = vadd.f32 %v320, %v455
        %v457 = vpop.f32.mrf.mxu0
        %v458 = vpop.f32.mrf.mxu0
        %v459 = vadd.f32 %v320, %v458
        %v460 = vpop.f32.mrf.mxu0
        %461 = vmatprep.mubr.bf16.mxu0 0
        %462 = vmatmul.mubr.bf16.gmra.mxu0 %v360
        %v463 = vpop.f32.mrf.mxu0
        %v464 = vadd.f32 %v320, %v463
        %v465 = vpop.f32.mrf.mxu0
        %v466 = vpop.f32.mrf.mxu0
        %v467 = vadd.f32 %v320, %v466
        %v468 = vpop.f32.mrf.mxu0
        %469 = vmatprep.mubr.bf16.mxu0 0
        %470 = vmatmul.mubr.bf16.gmra.mxu0 %v363
        %v471 = vpop.f32.mrf.mxu0
        %v472 = vadd.f32 %v320, %v471
        %v473 = vpop.f32.mrf.mxu0
        %v474 = vpop.f32.mrf.mxu0
        %v475 = vadd.f32 %v320, %v474
        %v476 = vpop.f32.mrf.mxu0
        %477 = vdwg.mxu0
        %v478 = vmax.f32 %v400, 0.0
        %v479 = vmax.f32 %v403, 0.0
        %v480 = vmax.f32 %v408, 0.0
        %v481 = vmax.f32 %v411, 0.0
        %v482 = vmax.f32 %v416, 0.0
        %v483 = vmax.f32 %v419, 0.0
        %v484 = vmax.f32 %v424, 0.0
        %v485 = vmax.f32 %v427, 0.0
        %v486 = vmax.f32 %v432, 0.0
        %v487 = vmax.f32 %v435, 0.0
        %v488 = vmax.f32 %v440, 0.0
        %v489 = vmax.f32 %v443, 0.0
        %v490 = vmax.f32 %v448, 0.0
        %v491 = vmax.f32 %v451, 0.0
        %v492 = vmax.f32 %v456, 0.0
        %v493 = vmax.f32 %v459, 0.0
        %v494 = vmax.f32 %v464, 0.0
        %v495 = vmax.f32 %v467, 0.0
        %v496 = vmax.f32 %v472, 0.0
        %v497 = vmax.f32 %v475, 0.0
        %v498 = vpack.c.bf16 %v479, %v478
        %v499 = vpack.c.bf16 %v481, %v480
        %v500 = vpack.c.bf16 %v483, %v482
        %v501 = vpack.c.bf16 %v485, %v484
        %v502 = vpack.c.bf16 %v487, %v486
        %v503 = vpack.c.bf16 %v489, %v488
        %v504 = vpack.c.bf16 %v491, %v490
        %v505 = vpack.c.bf16 %v493, %v492
        %v506 = vpack.c.bf16 %v495, %v494
        %v507 = vpack.c.bf16 %v497, %v496
        %v508 = vld [vmem:[%s3] sm:$0xf]
        %v509 = vld [vmem:[%s3 + $0x4] sm:$0xf]
        %v510 = vld [vmem:[%s3 + $0x8] sm:$0xf]
        %v511 = vld [vmem:[%s3 + $0xc] sm:$0xf]
        %v512 = vld [vmem:[%s3 + $0x10] sm:$0xf]
        %v513 = vld [vmem:[%s3 + $0x14] sm:$0xf]
        %v514 = vld [vmem:[%s3 + $0x18] sm:$0xf]
        %v515 = vld [vmem:[%s3 + $0x1c] sm:$0xf]
        %v516 = vld [vmem:[%s3 + $0x20] sm:$0xf]
        %v517 = vld [vmem:[%s3 + $0x24] sm:$0xf]
        %v518 = vld [vmem:[%s3 + $0x28] sm:$0xf]
        %v519 = vld [vmem:[%s3 + $0x2c] sm:$0xf]
        %v520 = vld [vmem:[%s3 + $0x30] sm:$0xf]
        %v521 = vld [vmem:[%s3 + $0x34] sm:$0xf]
        %v522 = vld [vmem:[%s3 + $0x38] sm:$0xf]
        %v523 = vld [vmem:[%s3 + $0x3c] sm:$0xf]
        %v524 = vld [vmem:[%s4] sm:$0x1]
        %v526 = vlaneseq
        %v527 = vshrl.u32 %v526, 7
        %v528 = vsub.s32 0, %v527
        %v529 = vrot.slane %v524, %v528
        %v547 = vunpack.c.l.b16 %v508
        %v548 = vunpack.c.l.b16 %v509
        %v549 = vunpack.c.l.b16 %v510
        %v550 = vunpack.c.l.b16 %v511
        %v551 = vunpack.c.l.b16 %v512
        %v552 = vunpack.c.l.b16 %v513
        %v553 = vunpack.c.l.b16 %v514
        %v554 = vunpack.c.l.b16 %v515
        %v555 = vunpack.c.l.b16 %v516
        %v556 = vunpack.c.l.b16 %v517
        %v557 = vunpack.c.l.b16 %v518
        %v558 = vunpack.c.l.b16 %v519
        %v559 = vunpack.c.l.b16 %v520
        %v560 = vunpack.c.l.b16 %v521
        %v561 = vunpack.c.l.b16 %v522
        %v562 = vunpack.c.l.b16 %v523
        %v563 = vpack.c.b16 %v548, %v547
        %v564 = vpack.c.b16 %v550, %v549
        %v565 = vpack.c.b16 %v552, %v551
        %v566 = vpack.c.b16 %v554, %v553
        %v567 = vpack.c.b16 %v556, %v555
        %v568 = vpack.c.b16 %v558, %v557
        %v569 = vpack.c.b16 %v560, %v559
        %v570 = vpack.c.b16 %v562, %v561
        %579 = vmatprep.subr.bf16.mxu0 0
        %580 = vmatpush1.bf16.msra.mxu0 %v570
        %581 = vmatprep.subr.bf16.mxu0 0
        %582 = vmatpush1.bf16.msra.mxu0 %v569
        %583 = vmatprep.subr.bf16.mxu0 0
        %584 = vmatpush1.bf16.msra.mxu0 %v568
        %585 = vmatprep.subr.bf16.mxu0 0
        %586 = vmatpush1.bf16.msra.mxu0 %v567
        %587 = vmatprep.subr.bf16.mxu0 0
        %588 = vmatpush1.bf16.msra.mxu0 %v566
        %589 = vmatprep.subr.bf16.mxu0 0
        %590 = vmatpush1.bf16.msra.mxu0 %v565
        %591 = vmatprep.subr.bf16.mxu0 0
        %592 = vmatpush1.bf16.msra.mxu0 %v564
        %593 = vmatprep.subr.bf16.mxu0 0
        %594 = vmatpush1.bf16.msra.mxu0 %v563
        %595 = vmatprep.subr.bf16.mxu0 0
        %596 = vmatpush2.bf16.msra.mxu0 0
        %597 = vmatprep.subr.bf16.mxu0 0
        %598 = vmatpush2.bf16.msra.mxu0 0
        %599 = vmatprep.subr.bf16.mxu0 0
        %600 = vmatpush2.bf16.msra.mxu0 0
        %601 = vmatprep.subr.bf16.mxu0 0
        %602 = vmatpush2.bf16.msra.mxu0 0
        %603 = vmatprep.subr.bf16.mxu0 0
        %604 = vmatpush2.bf16.msra.mxu0 0
        %605 = vmatprep.subr.bf16.mxu0 0
        %606 = vmatpush2.bf16.msra.mxu0 0
        %607 = vmatprep.subr.bf16.mxu0 0
        %608 = vmatpush2.bf16.msra.mxu0 0
        %609 = vmatprep.subr.bf16.mxu0 0
        %610 = vmatpush2.bf16.msra.mxu0 0
        %611 = vmatprep.mubr.bf16.mxu0 0
        %612 = vmatmul.mubr.bf16.gmra.mxu0 %v498
        %v613 = vpop.f32.mrf.mxu0
        %v614 = vadd.f32 %v529, %v613
        %v615 = vpop.f32.mrf.mxu0
        %v616 = vpop.f32.mrf.mxu0
        %v617 = vadd.f32 %v529, %v616
        %v618 = vpop.f32.mrf.mxu0
        %619 = vmatprep.mubr.bf16.mxu0 0
        %620 = vmatmul.mubr.bf16.gmra.mxu0 %v499
        %v621 = vpop.f32.mrf.mxu0
        %v622 = vadd.f32 %v529, %v621
        %v623 = vpop.f32.mrf.mxu0
        %v624 = vpop.f32.mrf.mxu0
        %v625 = vadd.f32 %v529, %v624
        %v626 = vpop.f32.mrf.mxu0
        %627 = vmatprep.mubr.bf16.mxu0 0
        %628 = vmatmul.mubr.bf16.gmra.mxu0 %v500
        %v629 = vpop.f32.mrf.mxu0
        %v630 = vadd.f32 %v529, %v629
        %v631 = vpop.f32.mrf.mxu0
        %v632 = vpop.f32.mrf.mxu0
        %v633 = vadd.f32 %v529, %v632
        %v634 = vpop.f32.mrf.mxu0
        %635 = vmatprep.mubr.bf16.mxu0 0
        %636 = vmatmul.mubr.bf16.gmra.mxu0 %v501
        %v637 = vpop.f32.mrf.mxu0
        %v638 = vadd.f32 %v529, %v637
        %v639 = vpop.f32.mrf.mxu0
        %v640 = vpop.f32.mrf.mxu0
        %v641 = vadd.f32 %v529, %v640
        %v642 = vpop.f32.mrf.mxu0
        %643 = vmatprep.mubr.bf16.mxu0 0
        %644 = vmatmul.mubr.bf16.gmra.mxu0 %v502
        %v645 = vpop.f32.mrf.mxu0
        %v646 = vadd.f32 %v529, %v645
        %v647 = vpop.f32.mrf.mxu0
        %v648 = vpop.f32.mrf.mxu0
        %v649 = vadd.f32 %v529, %v648
        %v650 = vpop.f32.mrf.mxu0
        %651 = vmatprep.mubr.bf16.mxu0 0
        %652 = vmatmul.mubr.bf16.gmra.mxu0 %v503
        %v653 = vpop.f32.mrf.mxu0
        %v654 = vadd.f32 %v529, %v653
        %v655 = vpop.f32.mrf.mxu0
        %v656 = vpop.f32.mrf.mxu0
        %v657 = vadd.f32 %v529, %v656
        %v658 = vpop.f32.mrf.mxu0
        %659 = vmatprep.mubr.bf16.mxu0 0
        %660 = vmatmul.mubr.bf16.gmra.mxu0 %v504
        %v661 = vpop.f32.mrf.mxu0
        %v662 = vadd.f32 %v529, %v661
        %v663 = vpop.f32.mrf.mxu0
        %v664 = vpop.f32.mrf.mxu0
        %v665 = vadd.f32 %v529, %v664
        %v666 = vpop.f32.mrf.mxu0
        %667 = vmatprep.mubr.bf16.mxu0 0
        %668 = vmatmul.mubr.bf16.gmra.mxu0 %v505
        %v669 = vpop.f32.mrf.mxu0
        %v670 = vadd.f32 %v529, %v669
        %v671 = vpop.f32.mrf.mxu0
        %v672 = vpop.f32.mrf.mxu0
        %v673 = vadd.f32 %v529, %v672
        %v674 = vpop.f32.mrf.mxu0
        %675 = vmatprep.mubr.bf16.mxu0 0
        %676 = vmatmul.mubr.bf16.gmra.mxu0 %v506
        %v677 = vpop.f32.mrf.mxu0
        %v678 = vadd.f32 %v529, %v677
        %v679 = vpop.f32.mrf.mxu0
        %v680 = vpop.f32.mrf.mxu0
        %v681 = vadd.f32 %v529, %v680
        %v682 = vpop.f32.mrf.mxu0
        %683 = vmatprep.mubr.bf16.mxu0 0
        %684 = vmatmul.mubr.bf16.gmra.mxu0 %v507
        %v685 = vpop.f32.mrf.mxu0
        %v686 = vadd.f32 %v529, %v685
        %v687 = vpop.f32.mrf.mxu0
        %v688 = vpop.f32.mrf.mxu0
        %v689 = vadd.f32 %v529, %v688
        %v690 = vpop.f32.mrf.mxu0
        %691 = vdwg.mxu0
        %v692 = vmax.f32 %v614, 0.0
        %v693 = vmax.f32 %v617, 0.0
        %v694 = vmax.f32 %v622, 0.0
        %v695 = vmax.f32 %v625, 0.0
        %v696 = vmax.f32 %v630, 0.0
        %v697 = vmax.f32 %v633, 0.0
        %v698 = vmax.f32 %v638, 0.0
        %v699 = vmax.f32 %v641, 0.0
        %v700 = vmax.f32 %v646, 0.0
        %v701 = vmax.f32 %v649, 0.0
        %v702 = vmax.f32 %v654, 0.0
        %v703 = vmax.f32 %v657, 0.0
        %v704 = vmax.f32 %v662, 0.0
        %v705 = vmax.f32 %v665, 0.0
        %v706 = vmax.f32 %v670, 0.0
        %v707 = vmax.f32 %v673, 0.0
        %v708 = vmax.f32 %v678, 0.0
        %v709 = vmax.f32 %v681, 0.0
        %v710 = vmax.f32 %v686, 0.0
        %v711 = vmax.f32 %v689, 0.0
        %v712 = vpack.c.bf16 %v693, %v692
        %v713 = vpack.c.bf16 %v695, %v694
        %v714 = vpack.c.bf16 %v697, %v696
        %v715 = vpack.c.bf16 %v699, %v698
        %v716 = vpack.c.bf16 %v701, %v700
        %v717 = vpack.c.bf16 %v703, %v702
        %v718 = vpack.c.bf16 %v705, %v704
        %v719 = vpack.c.bf16 %v707, %v706
        %v720 = vpack.c.bf16 %v709, %v708
        %v721 = vpack.c.bf16 %v711, %v710
        %v722 = vld [vmem:[%s5] sm:$0xf]
        %v723 = vld [vmem:[%s5 + $0x4] sm:$0xf]
        %v724 = vld [vmem:[%s5 + $0x8] sm:$0xf]
        %v725 = vld [vmem:[%s5 + $0xc] sm:$0xf]
        %v726 = vld [vmem:[%s5 + $0x10] sm:$0xf]
        %v727 = vld [vmem:[%s5 + $0x14] sm:$0xf]
        %v728 = vld [vmem:[%s5 + $0x18] sm:$0xf]
        %v729 = vld [vmem:[%s5 + $0x1c] sm:$0xf]
        %v730 = vld [vmem:[%s5 + $0x20] sm:$0xf]
        %v731 = vld [vmem:[%s5 + $0x24] sm:$0xf]
        %v732 = vld [vmem:[%s5 + $0x28] sm:$0xf]
        %v733 = vld [vmem:[%s5 + $0x2c] sm:$0xf]
        %v734 = vld [vmem:[%s5 + $0x30] sm:$0xf]
        %v735 = vld [vmem:[%s5 + $0x34] sm:$0xf]
        %v736 = vld [vmem:[%s5 + $0x38] sm:$0xf]
        %v737 = vld [vmem:[%s5 + $0x3c] sm:$0xf]
        %v738 = vld [vmem:[%s6] sm:$0x1]
        %v740 = vlaneseq
        %v741 = vshrl.u32 %v740, 7
        %v742 = vsub.s32 0, %v741
        %v743 = vrot.slane %v738, %v742
        %v761 = vunpack.c.l.b16 %v722
        %v762 = vunpack.c.l.b16 %v723
        %v763 = vunpack.c.l.b16 %v724
        %v764 = vunpack.c.l.b16 %v725
        %v765 = vunpack.c.l.b16 %v726
        %v766 = vunpack.c.l.b16 %v727
        %v767 = vunpack.c.l.b16 %v728
        %v768 = vunpack.c.l.b16 %v729
        %v769 = vunpack.c.l.b16 %v730
        %v770 = vunpack.c.l.b16 %v731
        %v771 = vunpack.c.l.b16 %v732
        %v772 = vunpack.c.l.b16 %v733
        %v773 = vunpack.c.l.b16 %v734
        %v774 = vunpack.c.l.b16 %v735
        %v775 = vunpack.c.l.b16 %v736
        %v776 = vunpack.c.l.b16 %v737
        %v777 = vpack.c.b16 %v762, %v761
        %v778 = vpack.c.b16 %v764, %v763
        %v779 = vpack.c.b16 %v766, %v765
        %v780 = vpack.c.b16 %v768, %v767
        %v781 = vpack.c.b16 %v770, %v769
        %v782 = vpack.c.b16 %v772, %v771
        %v783 = vpack.c.b16 %v774, %v773
        %v784 = vpack.c.b16 %v776, %v775
        %793 = vmatprep.subr.bf16.mxu0 0
        %794 = vmatpush1.bf16.msra.mxu0 %v784
        %795 = vmatprep.subr.bf16.mxu0 0
        %796 = vmatpush1.bf16.msra.mxu0 %v783
        %797 = vmatprep.subr.bf16.mxu0 0
        %798 = vmatpush1.bf16.msra.mxu0 %v782
        %799 = vmatprep.subr.bf16.mxu0 0
        %800 = vmatpush1.bf16.msra.mxu0 %v781
        %801 = vmatprep.subr.bf16.mxu0 0
        %802 = vmatpush1.bf16.msra.mxu0 %v780
        %803 = vmatprep.subr.bf16.mxu0 0
        %804 = vmatpush1.bf16.msra.mxu0 %v779
        %805 = vmatprep.subr.bf16.mxu0 0
        %806 = vmatpush1.bf16.msra.mxu0 %v778
        %807 = vmatprep.subr.bf16.mxu0 0
        %808 = vmatpush1.bf16.msra.mxu0 %v777
        %809 = vmatprep.subr.bf16.mxu0 0
        %810 = vmatpush2.bf16.msra.mxu0 0
        %811 = vmatprep.subr.bf16.mxu0 0
        %812 = vmatpush2.bf16.msra.mxu0 0
        %813 = vmatprep.subr.bf16.mxu0 0
        %814 = vmatpush2.bf16.msra.mxu0 0
        %815 = vmatprep.subr.bf16.mxu0 0
        %816 = vmatpush2.bf16.msra.mxu0 0
        %817 = vmatprep.subr.bf16.mxu0 0
        %818 = vmatpush2.bf16.msra.mxu0 0
        %819 = vmatprep.subr.bf16.mxu0 0
        %820 = vmatpush2.bf16.msra.mxu0 0
        %821 = vmatprep.subr.bf16.mxu0 0
        %822 = vmatpush2.bf16.msra.mxu0 0
        %823 = vmatprep.subr.bf16.mxu0 0
        %824 = vmatpush2.bf16.msra.mxu0 0
        %825 = vmatprep.mubr.bf16.mxu0 0
        %826 = vmatmul.mubr.bf16.gmra.mxu0 %v712
        %v827 = vpop.f32.mrf.mxu0
        %v828 = vadd.f32 %v743, %v827
        %v829 = vpop.f32.mrf.mxu0
        %v830 = vpop.f32.mrf.mxu0
        %v831 = vadd.f32 %v743, %v830
        %v832 = vpop.f32.mrf.mxu0
        %833 = vmatprep.mubr.bf16.mxu0 0
        %834 = vmatmul.mubr.bf16.gmra.mxu0 %v713
        %v835 = vpop.f32.mrf.mxu0
        %v836 = vadd.f32 %v743, %v835
        %v837 = vpop.f32.mrf.mxu0
        %v838 = vpop.f32.mrf.mxu0
        %v839 = vadd.f32 %v743, %v838
        %v840 = vpop.f32.mrf.mxu0
        %841 = vmatprep.mubr.bf16.mxu0 0
        %842 = vmatmul.mubr.bf16.gmra.mxu0 %v714
        %v843 = vpop.f32.mrf.mxu0
        %v844 = vadd.f32 %v743, %v843
        %v845 = vpop.f32.mrf.mxu0
        %v846 = vpop.f32.mrf.mxu0
        %v847 = vadd.f32 %v743, %v846
        %v848 = vpop.f32.mrf.mxu0
        %849 = vmatprep.mubr.bf16.mxu0 0
        %850 = vmatmul.mubr.bf16.gmra.mxu0 %v715
        %v851 = vpop.f32.mrf.mxu0
        %v852 = vadd.f32 %v743, %v851
        %v853 = vpop.f32.mrf.mxu0
        %v854 = vpop.f32.mrf.mxu0
        %v855 = vadd.f32 %v743, %v854
        %v856 = vpop.f32.mrf.mxu0
        %857 = vmatprep.mubr.bf16.mxu0 0
        %858 = vmatmul.mubr.bf16.gmra.mxu0 %v716
        %v859 = vpop.f32.mrf.mxu0
        %v860 = vadd.f32 %v743, %v859
        %v861 = vpop.f32.mrf.mxu0
        %v862 = vpop.f32.mrf.mxu0
        %v863 = vadd.f32 %v743, %v862
        %v864 = vpop.f32.mrf.mxu0
        %865 = vmatprep.mubr.bf16.mxu0 0
        %866 = vmatmul.mubr.bf16.gmra.mxu0 %v717
        %v867 = vpop.f32.mrf.mxu0
        %v868 = vadd.f32 %v743, %v867
        %v869 = vpop.f32.mrf.mxu0
        %v870 = vpop.f32.mrf.mxu0
        %v871 = vadd.f32 %v743, %v870
        %v872 = vpop.f32.mrf.mxu0
        %873 = vmatprep.mubr.bf16.mxu0 0
        %874 = vmatmul.mubr.bf16.gmra.mxu0 %v718
        %v875 = vpop.f32.mrf.mxu0
        %v876 = vadd.f32 %v743, %v875
        %v877 = vpop.f32.mrf.mxu0
        %v878 = vpop.f32.mrf.mxu0
        %v879 = vadd.f32 %v743, %v878
        %v880 = vpop.f32.mrf.mxu0
        %881 = vmatprep.mubr.bf16.mxu0 0
        %882 = vmatmul.mubr.bf16.gmra.mxu0 %v719
        %v883 = vpop.f32.mrf.mxu0
        %v884 = vadd.f32 %v743, %v883
        %v885 = vpop.f32.mrf.mxu0
        %v886 = vpop.f32.mrf.mxu0
        %v887 = vadd.f32 %v743, %v886
        %v888 = vpop.f32.mrf.mxu0
        %889 = vmatprep.mubr.bf16.mxu0 0
        %890 = vmatmul.mubr.bf16.gmra.mxu0 %v720
        %v891 = vpop.f32.mrf.mxu0
        %v892 = vadd.f32 %v743, %v891
        %v893 = vpop.f32.mrf.mxu0
        %v894 = vpop.f32.mrf.mxu0
        %v895 = vadd.f32 %v743, %v894
        %v896 = vpop.f32.mrf.mxu0
        %897 = vmatprep.mubr.bf16.mxu0 0
        %898 = vmatmul.mubr.bf16.gmra.mxu0 %v721
        %v899 = vpop.f32.mrf.mxu0
        %v900 = vadd.f32 %v743, %v899
        %v901 = vpop.f32.mrf.mxu0
        %v902 = vpop.f32.mrf.mxu0
        %v903 = vadd.f32 %v743, %v902
        %v904 = vpop.f32.mrf.mxu0
        %905 = vdwg.mxu0
        %v906 = vpack.c.bf16 %v831, %v828
        %v907 = vpack.c.bf16 %v839, %v836
        %v908 = vpack.c.bf16 %v847, %v844
        %v909 = vpack.c.bf16 %v855, %v852
        %v910 = vpack.c.bf16 %v863, %v860
        %v911 = vpack.c.bf16 %v871, %v868
        %v912 = vpack.c.bf16 %v879, %v876
        %v913 = vpack.c.bf16 %v887, %v884
        %v914 = vpack.c.bf16 %v895, %v892
        %v915 = vpack.c.bf16 %v903, %v900
        %v926 = vunpack.c.l.b16 %v906
        %v927 = vunpack.c.h.b16 %v906
        %v928 = vunpack.c.l.b16 %v907
        %v929 = vunpack.c.h.b16 %v907
        %v930 = vunpack.c.l.b16 %v908
        %v931 = vunpack.c.h.b16 %v908
        %v932 = vunpack.c.l.b16 %v909
        %v933 = vunpack.c.h.b16 %v909
        %v934 = vunpack.c.l.b16 %v910
        %v935 = vunpack.c.h.b16 %v910
        %v936 = vunpack.c.l.b16 %v911
        %v937 = vunpack.c.h.b16 %v911
        %v938 = vunpack.c.l.b16 %v912
        %v939 = vunpack.c.h.b16 %v912
        %v940 = vunpack.c.l.b16 %v913
        %v941 = vunpack.c.h.b16 %v913
        %v942 = vunpack.c.l.b16 %v914
        %v943 = vunpack.c.h.b16 %v914
        %v944 = vunpack.c.l.b16 %v915
        %v945 = vunpack.c.h.b16 %v915
        %v946 = vpack.c.b16 %v926, %v926
        %v947 = vpack.c.b16 %v927, %v927
        %v948 = vpack.c.b16 %v928, %v928
        %v949 = vpack.c.b16 %v929, %v929
        %v950 = vpack.c.b16 %v930, %v930
        %v951 = vpack.c.b16 %v931, %v931
        %v952 = vpack.c.b16 %v932, %v932
        %v953 = vpack.c.b16 %v933, %v933
        %v954 = vpack.c.b16 %v934, %v934
        %v955 = vpack.c.b16 %v935, %v935
        %v956 = vpack.c.b16 %v936, %v936
        %v957 = vpack.c.b16 %v937, %v937
        %v958 = vpack.c.b16 %v938, %v938
        %v959 = vpack.c.b16 %v939, %v939
        %v960 = vpack.c.b16 %v940, %v940
        %v961 = vpack.c.b16 %v941, %v941
        %v962 = vpack.c.b16 %v942, %v942
        %v963 = vpack.c.b16 %v943, %v943
        %v964 = vpack.c.b16 %v944, %v944
        %v965 = vpack.c.b16 %v945, %v945
        %986 = vst [vmem:[%s272] sm:$0xf] %v946
        %987 = vst [vmem:[%s272 + $0x4] sm:$0xf] %v947
        %988 = vst [vmem:[%s272 + $0x8] sm:$0xf] %v948
        %989 = vst [vmem:[%s272 + $0xc] sm:$0xf] %v949
        %990 = vst [vmem:[%s272 + $0x10] sm:$0xf] %v950
        %991 = vst [vmem:[%s272 + $0x14] sm:$0xf] %v951
        %992 = vst [vmem:[%s272 + $0x18] sm:$0xf] %v952
        %993 = vst [vmem:[%s272 + $0x1c] sm:$0xf] %v953
        %994 = vst [vmem:[%s272 + $0x20] sm:$0xf] %v954
        %995 = vst [vmem:[%s272 + $0x24] sm:$0xf] %v955
        %996 = vst [vmem:[%s272 + $0x28] sm:$0xf] %v956
        %997 = vst [vmem:[%s272 + $0x2c] sm:$0xf] %v957
        %998 = vst [vmem:[%s272 + $0x30] sm:$0xf] %v958
        %999 = vst [vmem:[%s272 + $0x34] sm:$0xf] %v959
        %1000 = vst [vmem:[%s272 + $0x38] sm:$0xf] %v960
        %1001 = vst [vmem:[%s272 + $0x3c] sm:$0xf] %v961
        %1002 = vst [vmem:[%s272 + $0x40] sm:$0xf] %v962
        %1003 = vst [vmem:[%s272 + $0x44] sm:$0xf] %v963
        %1004 = vst [vmem:[%s272 + $0x48] sm:$0xf] %v964
        %1005 = vst [vmem:[%s272 + $0x4c] sm:$0xf] %v965
        %s1006 = sand.u32 %s181, 1
        %s1007 = scalar_lea.sflag [#allocation3], %s1006
        %s1008 = sand.u32 %s181, 1
        %s1009 = smul.addr %s1008, 80
        %s1010 = scalar_lea.vmem [#allocation2], %s1009
        // Predicated region
        $region49: #{tpu_custom_call.1} parent=47 // pred_check
          %p1011 = pneg %p191
        $region50: #{tpu_custom_call.1} parent=47 // pred_check_branch
          %1013 = sbr.rel (%p1011) target = $region52
        $region51: #{tpu_custom_call.1} parent=47 // pred_region
          %s1014 = smul.u32 20, %s21
          %s1016 = ssub.s32 1280, 1280
          %1017 = vsyncadd %s1007, %s1016
          %s1018 = smul.addr %s1014, 64
          %s1019 = scalar_lea.hbm %s7, %s1018
          %s1020 = sshll.u32 %s1010, 4
          %s1021 = int_to_ptr.vmem [resolvable:$true] %s1020
          %1026 = dma.vmem_to_hbm [thread:$0]  %s1021, 1280, %s1019, %s1007, 64, 64, 4
        $region52: #{tpu_custom_call.1} parent=47 // pred_fallthru
          _
      $region48: #{tpu_custom_call.1} parent=5 // pred_fallthru
        _
      %p1027 = scmp.le.s32.totalorder 2, %s16
      // Predicated region
      $region53: #{tpu_custom_call.1} parent=5 // pred_check
        %p1028 = pneg %p1027
      $region54: #{tpu_custom_call.1} parent=5 // pred_check_branch
        %1030 = sbr.rel (%p1028) target = $region56
      $region55: #{tpu_custom_call.1} parent=5 // pred_region
        %s1031 = ssub.s32 %s16, 2
        // Predicated region
        $region57: #{tpu_custom_call.1} parent=55 // pred_check
          %p1032 = pneg %p197
        $region58: #{tpu_custom_call.1} parent=55 // pred_check_branch
          %1034 = sbr.rel (%p1032) target = $region60
        $region59: #{tpu_custom_call.1} parent=55 // pred_region
          %s1035 = sand.u32 %s182, 1
          %s1036 = scalar_lea.sflag [#allocation3], %s1035
          %s1037 = sand.u32 %s182, 1
          %s1038 = smul.addr %s1037, 80
          %s1039 = scalar_lea.vmem [#allocation2], %s1038
          %1040 = dma.done %s1036, 1280
        $region60: #{tpu_custom_call.1} parent=55 // pred_fallthru
          _
      $region56: #{tpu_custom_call.1} parent=5 // pred_fallthru
        _
    $region6: #{tpu_custom_call.1} parent=1 // loop_footer
      %s20 = sadd.s32 1, %s16
    $region7: #{tpu_custom_call.1} parent=1 // loop_footer_branch
      %15 = sbr.rel target = $region3
    $region8: #{tpu_custom_call.1} parent=1 // loop_exit
      _
    %1041 = vsyncpa [#allocation3], 1
    %s1042 = scalar_lea.sflag [#allocation3], 1
    %1043 = vsyncpa %s1042, 1

// kernel: tpu_custom_call.1
$region0: #{tpu_custom_call.1}
  #allocation0 [shape = 'u32[]', space=smem, size = 0x4, offset = 0x4, fixed_abs, tag = 'smem constant byte address 0x4 - core index']
  #allocation1 [shape = 'u32[144,128]{1,0:T(1,128)}', space=vmem, size = 0x12000, scoped, tag = 'internal scratch']
  %s0 = inlined_call_operand.vmem [shape: f32[320,32], index: 0, kind: input, shape index: {}]
  %s1 = inlined_call_operand.vmem [shape: bf16[32,128], index: 1, kind: input, shape index: {}]
  %s2 = inlined_call_operand.vmem [shape: f32[1,128], index: 2, kind: input, shape index: {}]
  %s3 = inlined_call_operand.vmem [shape: bf16[128,128], index: 3, kind: input, shape index: {}]
  %s4 = inlined_call_operand.vmem [shape: f32[1,128], index: 4, kind: input, shape index: {}]
  %s5 = inlined_call_operand.vmem [shape: bf16[128,128], index: 5, kind: input, shape index: {}]
  %s6 = inlined_call_operand.vmem [shape: f32[1,128], index: 6, kind: input, shape index: {}]
  %s7 = inlined_call_operand.hbm [shape: bf16[320,128], index: 7, kind: output, shape index: {}]
  %s8 = sld [smem:[#allocation0]]
  $region61: #{tpu_custom_call.1} parent=0
    _
  %s10 = ssub.s32 1, %s8
  %s11 = scalar_select 0, %s10, %s8
  $region1: #{tpu_custom_call.1} parent=0
    #allocation2 [shape = 'u8[81920]{0}', space=vmem, size = 0x14000, scoped, tag = 'output window, operand 0']
    #allocation3 [shape = 's32[2]{0}', space=sflag, size = 0x8, scoped, tag = 'scoped memory for tpu_custom_call.1']
    %12 = vsyncpa [#allocation3], 0
    %s13 = scalar_lea.sflag [#allocation3], 1
    %14 = vsyncpa %s13, 0
    loop: start=0, step=1, limit=4
    $region2: #{tpu_custom_call.1} parent=1 // loop_pre_header
      _
    $region3: #{tpu_custom_call.1} parent=1 // loop_header
      %s16 = sphi 0, %s20
      %p17 = scmp.ge.s32.totalorder %s16, 4
      %s26 = sphi 0, %s28
      %s29 = sphi 0, %s26
      %s30 = sphi 0, %s29
      %s46 = sphi 0, %s30
      %s50 = sphi 0, %s50
      %s52 = sphi 0, %s50
      %s53 = sphi 0, %s52
      %s67 = sphi 0, %s53
      %s71 = sphi 0, %s71
      %s73 = sphi 0, %s71
      %s74 = sphi 0, %s73
      %s88 = sphi 0, %s74
      %s92 = sphi 0, %s92
      %s94 = sphi 0, %s92
      %s95 = sphi 0, %s94
      %s109 = sphi 0, %s95
      %s113 = sphi 0, %s113
      %s115 = sphi 0, %s113
      %s116 = sphi 0, %s115
      %s130 = sphi 0, %s116
      %s134 = sphi 0, %s134
      %s136 = sphi 0, %s134
      %s137 = sphi 0, %s136
      %s151 = sphi 0, %s137
      %s155 = sphi 0, %s155
      %s157 = sphi 0, %s155
      %s158 = sphi 0, %s157
      %s172 = sphi 0, %s158
      %s178 = sphi 0, %s180
      %s181 = sphi 0, %s178
      %s182 = sphi 0, %s181
      %s198 = sphi 0, %s182
    $region4: #{tpu_custom_call.1} parent=1 // loop_header_branch
      %19 = sbr.rel (%p17) target = $region8
    $region5: #{tpu_custom_call.1} parent=1 // loop_body
      %s21 = ssub.s32 %s16, 1
      %s22 = ssub.s32 %s16, 2
      %s23 = sadd.s32 %s16, 1
      %s24 = ssub.s32 %s16, %s23
      %p25 = scmp.eq.s32.totalorder %s24, 0
      %s27 = sadd.s32 %s26, 1
      %s28 = scalar_select %p25, %s26, %s27
      %p31 = pneg %p25
      %p32 = scmp.eq.s32.totalorder %s16, 1
      %p33 = por %p31, %p32
      %p34 = scmp.ne.s32.totalorder %s26, %s29
      %p35 = scmp.eq.s32.totalorder %s16, 0
      %p36 = por %p34, %p35
      %p37 = scmp.ne.s32.totalorder %s26, %s29
      %p38 = scmp.eq.s32.totalorder %s21, 1
      %p39 = por %p37, %p38
      %p40 = scmp.ne.s32.totalorder %s29, %s30
      %p41 = scmp.eq.s32.totalorder %s21, 0
      %p42 = por %p40, %p41
      %p43 = scmp.ne.s32.totalorder %s29, %s30
      %p44 = scmp.eq.s32.totalorder %s22, 1
      %p45 = por %p43, %p44
      %p47 = scmp.ne.s32.totalorder %s30, %s46
      %p48 = scmp.eq.s32.totalorder %s22, 0
      %p49 = por %p47, %p48
      %s51 = sadd.s32 %s50, 1
      %p54 = scmp.eq.s32.totalorder %s16, 1
      %p55 = scmp.ne.s32.totalorder %s50, %s52
      %p56 = scmp.eq.s32.totalorder %s16, 0
      %p57 = por %p55, %p56
      %p58 = scmp.ne.s32.totalorder %s50, %s52
      %p59 = scmp.eq.s32.totalorder %s21, 1
      %p60 = por %p58, %p59
      %p61 = scmp.ne.s32.totalorder %s52, %s53
      %p62 = scmp.eq.s32.totalorder %s21, 0
      %p63 = por %p61, %p62
      %p64 = scmp.ne.s32.totalorder %s52, %s53
      %p65 = scmp.eq.s32.totalorder %s22, 1
      %p66 = por %p64, %p65
      %p68 = scmp.ne.s32.totalorder %s53, %s67
      %p69 = scmp.eq.s32.totalorder %s22, 0
      %p70 = por %p68, %p69
      %s72 = sadd.s32 %s71, 1
      %p75 = scmp.eq.s32.totalorder %s16, 1
      %p76 = scmp.ne.s32.totalorder %s71, %s73
      %p77 = scmp.eq.s32.totalorder %s16, 0
      %p78 = por %p76, %p77
      %p79 = scmp.ne.s32.totalorder %s71, %s73
      %p80 = scmp.eq.s32.totalorder %s21, 1
      %p81 = por %p79, %p80
      %p82 = scmp.ne.s32.totalorder %s73, %s74
      %p83 = scmp.eq.s32.totalorder %s21, 0
      %p84 = por %p82, %p83
      %p85 = scmp.ne.s32.totalorder %s73, %s74
      %p86 = scmp.eq.s32.totalorder %s22, 1
      %p87 = por %p85, %p86
      %p89 = scmp.ne.s32.totalorder %s74, %s88
      %p90 = scmp.eq.s32.totalorder %s22, 0
      %p91 = por %p89, %p90
      %s93 = sadd.s32 %s92, 1
      %p96 = scmp.eq.s32.totalorder %s16, 1
      %p97 = scmp.ne.s32.totalorder %s92, %s94
      %p98 = scmp.eq.s32.totalorder %s16, 0
      %p99 = por %p97, %p98
      %p100 = scmp.ne.s32.totalorder %s92, %s94
      %p101 = scmp.eq.s32.totalorder %s21, 1
      %p102 = por %p100, %p101
      %p103 = scmp.ne.s32.totalorder %s94, %s95
      %p104 = scmp.eq.s32.totalorder %s21, 0
      %p105 = por %p103, %p104
      %p106 = scmp.ne.s32.totalorder %s94, %s95
      %p107 = scmp.eq.s32.totalorder %s22, 1
      %p108 = por %p106, %p107
      %p110 = scmp.ne.s32.totalorder %s95, %s109
      %p111 = scmp.eq.s32.totalorder %s22, 0
      %p112 = por %p110, %p111
      %s114 = sadd.s32 %s113, 1
      %p117 = scmp.eq.s32.totalorder %s16, 1
      %p118 = scmp.ne.s32.totalorder %s113, %s115
      %p119 = scmp.eq.s32.totalorder %s16, 0
      %p120 = por %p118, %p119
      %p121 = scmp.ne.s32.totalorder %s113, %s115
      %p122 = scmp.eq.s32.totalorder %s21, 1
      %p123 = por %p121, %p122
      %p124 = scmp.ne.s32.totalorder %s115, %s116
      %p125 = scmp.eq.s32.totalorder %s21, 0
      %p126 = por %p124, %p125
      %p127 = scmp.ne.s32.totalorder %s115, %s116
      %p128 = scmp.eq.s32.totalorder %s22, 1
      %p129 = por %p127, %p128
      %p131 = scmp.ne.s32.totalorder %s116, %s130
      %p132 = scmp.eq.s32.totalorder %s22, 0
      %p133 = por %p131, %p132
      %s135 = sadd.s32 %s134, 1
      %p138 = scmp.eq.s32.totalorder %s16, 1
      %p139 = scmp.ne.s32.totalorder %s134, %s136
      %p140 = scmp.eq.s32.totalorder %s16, 0
      %p141 = por %p139, %p140
      %p142 = scmp.ne.s32.totalorder %s134, %s136
      %p143 = scmp.eq.s32.totalorder %s21, 1
      %p144 = por %p142, %p143
      %p145 = scmp.ne.s32.totalorder %s136, %s137
      %p146 = scmp.eq.s32.totalorder %s21, 0
      %p147 = por %p145, %p146
      %p148 = scmp.ne.s32.totalorder %s136, %s137
      %p149 = scmp.eq.s32.totalorder %s22, 1
      %p150 = por %p148, %p149
      %p152 = scmp.ne.s32.totalorder %s137, %s151
      %p153 = scmp.eq.s32.totalorder %s22, 0
      %p154 = por %p152, %p153
      %s156 = sadd.s32 %s155, 1
      %p159 = scmp.eq.s32.totalorder %s16, 1
      %p160 = scmp.ne.s32.totalorder %s155, %s157
      %p161 = scmp.eq.s32.totalorder %s16, 0
      %p162 = por %p160, %p161
      %p163 = scmp.ne.s32.totalorder %s155, %s157
      %p164 = scmp.eq.s32.totalorder %s21, 1
      %p165 = por %p163, %p164
      %p166 = scmp.ne.s32.totalorder %s157, %s158
      %p167 = scmp.eq.s32.totalorder %s21, 0
      %p168 = por %p166, %p167
      %p169 = scmp.ne.s32.totalorder %s157, %s158
      %p170 = scmp.eq.s32.totalorder %s22, 1
      %p171 = por %p169, %p170
      %p173 = scmp.ne.s32.totalorder %s158, %s172
      %p174 = scmp.eq.s32.totalorder %s22, 0
      %p175 = por %p173, %p174
      %s176 = ssub.s32 %s16, %s23
      %p177 = scmp.eq.s32.totalorder %s176, 0
      %s179 = sadd.s32 %s178, 1
      %s180 = scalar_select %p177, %s178, %s179
      %p183 = pneg %p177
      %p184 = scmp.eq.s32.totalorder %s16, 1
      %p185 = por %p183, %p184
      %p186 = scmp.ne.s32.totalorder %s178, %s181
      %p187 = scmp.eq.s32.totalorder %s16, 0
      %p188 = por %p186, %p187
      %p189 = scmp.ne.s32.totalorder %s178, %s181
      %p190 = scmp.eq.s32.totalorder %s21, 1
      %p191 = por %p189, %p190
      %p192 = scmp.ne.s32.totalorder %s181, %s182
      %p193 = scmp.eq.s32.totalorder %s21, 0
      %p194 = por %p192, %p193
      %p195 = scmp.ne.s32.totalorder %s181, %s182
      %p196 = scmp.eq.s32.totalorder %s22, 1
      %p197 = por %p195, %p196
      %p199 = scmp.ne.s32.totalorder %s182, %s198
      %p200 = scmp.eq.s32.totalorder %s22, 0
      %p201 = por %p199, %p200
      %p202 = scmp.le.s32.totalorder 1, %s16
      %p203 = scmp.lt.s32.totalorder %s16, 3
      %p204 = pnand %p202, %p203
      %p205 = pneg %p204
      // Predicated region
      $region9: #{tpu_custom_call.1} parent=5 // pred_check
        _
      $region10: #{tpu_custom_call.1} parent=5 // pred_check_branch
        %207 = sbr.rel (%p204) target = $region12
      $region11: #{tpu_custom_call.1} parent=5 // pred_region
        %s208 = ssub.s32 %s16, 1
        // Predicated region
        $region13: #{tpu_custom_call.1} parent=11 // pred_check
          %p209 = pneg %p63
        $region14: #{tpu_custom_call.1} parent=11 // pred_check_branch
          %211 = sbr.rel (%p209) target = $region16
        $region15: #{tpu_custom_call.1} parent=11 // pred_region
          _
        $region16: #{tpu_custom_call.1} parent=11 // pred_fallthru
          _
        // Predicated region
        $region17: #{tpu_custom_call.1} parent=11 // pred_check
          %p212 = pneg %p84
        $region18: #{tpu_custom_call.1} parent=11 // pred_check_branch
          %214 = sbr.rel (%p212) target = $region20
        $region19: #{tpu_custom_call.1} parent=11 // pred_region
          _
        $region20: #{tpu_custom_call.1} parent=11 // pred_fallthru
          _
        // Predicated region
        $region21: #{tpu_custom_call.1} parent=11 // pred_check
          %p215 = pneg %p105
        $region22: #{tpu_custom_call.1} parent=11 // pred_check_branch
          %217 = sbr.rel (%p215) target = $region24
        $region23: #{tpu_custom_call.1} parent=11 // pred_region
          _
        $region24: #{tpu_custom_call.1} parent=11 // pred_fallthru
          _
        // Predicated region
        $region25: #{tpu_custom_call.1} parent=11 // pred_check
          %p218 = pneg %p126
        $region26: #{tpu_custom_call.1} parent=11 // pred_check_branch
          %220 = sbr.rel (%p218) target = $region28
        $region27: #{tpu_custom_call.1} parent=11 // pred_region
          _
        $region28: #{tpu_custom_call.1} parent=11 // pred_fallthru
          _
        // Predicated region
        $region29: #{tpu_custom_call.1} parent=11 // pred_check
          %p221 = pneg %p147
        $region30: #{tpu_custom_call.1} parent=11 // pred_check_branch
          %223 = sbr.rel (%p221) target = $region32
        $region31: #{tpu_custom_call.1} parent=11 // pred_region
          _
        $region32: #{tpu_custom_call.1} parent=11 // pred_fallthru
          _
        // Predicated region
        $region33: #{tpu_custom_call.1} parent=11 // pred_check
          %p224 = pneg %p168
        $region34: #{tpu_custom_call.1} parent=11 // pred_check_branch
          %226 = sbr.rel (%p224) target = $region36
        $region35: #{tpu_custom_call.1} parent=11 // pred_region
          _
        $region36: #{tpu_custom_call.1} parent=11 // pred_fallthru
          _
      $region12: #{tpu_custom_call.1} parent=5 // pred_fallthru
        _
      %p227 = scmp.lt.s32.totalorder %s16, 2
      // Predicated region
      $region37: #{tpu_custom_call.1} parent=5 // pred_check
        %p228 = pneg %p227
      $region38: #{tpu_custom_call.1} parent=5 // pred_check_branch
        %230 = sbr.rel (%p228) target = $region40
      $region39: #{tpu_custom_call.1} parent=5 // pred_region
        // Predicated region
        $region41: #{tpu_custom_call.1} parent=39 // pred_check
          %p231 = pneg %p36
        $region42: #{tpu_custom_call.1} parent=39 // pred_check_branch
          %233 = sbr.rel (%p231) target = $region44
        $region43: #{tpu_custom_call.1} parent=39 // pred_region
          %s234 = smul.u32 20, %s16
          %p235 = scmp.lt.s32.totalorder %s234, 39
          %s236 = scalar_select %p235, %s234, 39
          %s237 = smul.addr %s236, 8
          %s238 = scalar_lea.vmem %s0, %s237
          %s239 = smul.u32 20, %s16
        $region44: #{tpu_custom_call.1} parent=39 // pred_fallthru
          _
      $region40: #{tpu_custom_call.1} parent=5 // pred_fallthru
        _
      %p240 = scmp.le.s32.totalorder 1, %s16
      %p241 = scmp.lt.s32.totalorder %s16, 3
      %p242 = pnand %p240, %p241
      %p243 = pneg %p242
      // Predicated region
      $region45: #{tpu_custom_call.1} parent=5 // pred_check
        _
      $region46: #{tpu_custom_call.1} parent=5 // pred_check_branch
        %245 = sbr.rel (%p242) target = $region48
      $region47: #{tpu_custom_call.1} parent=5 // pred_region
        %s246 = ssub.s32 %s16, 1
        %s247 = smul.u32 20, %s21
        %p248 = scmp.lt.s32.totalorder %s247, 39
        %s249 = scalar_select %p248, %s247, 39
        %s250 = smul.addr %s249, 8
        %s251 = scalar_lea.vmem %s0, %s250
        %p252 = pneg %p42
        %p253 = pneg %p39
        %p254 = pneg %p63
        %p255 = pneg %p60
        %p256 = pneg %p84
        %p257 = pneg %p81
        %p258 = pneg %p105
        %p259 = pneg %p102
        %p260 = pneg %p126
        %p261 = pneg %p123
        %p262 = pneg %p147
        %p263 = pneg %p144
        %p264 = pneg %p168
        %p265 = pneg %p165
        %p266 = pneg %p194
        %p267 = pneg %p191
        %s268 = sand.u32 %s181, 1
        %s269 = scalar_lea.sflag [#allocation3], %s268
        %s270 = sand.u32 %s181, 1
        %s271 = smul.addr %s270, 80
        %s272 = scalar_lea.vmem [#allocation2], %s271
        %s273 = smul.u32 20, %s21
        %p274 = scmp.lt.s32.totalorder %s273, 39
        %s275 = scalar_select %p274, %s273, 39
        %s276 = smul.addr %s275, 8
        %s277 = scalar_lea.vmem %s0, %s276
        %s278 = smul.u32 20, %s21
        %s279 = smul.u32 20, %s21
        %v281 = vld [vmem:[%s277] sm:$0xff]
        %v282 = vld [vmem:[%s277 + $0x8] sm:$0xff]
        %v283 = vld [vmem:[%s277 + $0x10] sm:$0xff]
        %v284 = vld [vmem:[%s277 + $0x18] sm:$0xff]
        %v285 = vld [vmem:[%s277 + $0x20] sm:$0xff]
        %v286 = vld [vmem:[%s277 + $0x28] sm:$0xff]
        %v287 = vld [vmem:[%s277 + $0x30] sm:$0xff]
        %v288 = vld [vmem:[%s277 + $0x38] sm:$0xff]
        %v289 = vld [vmem:[%s277 + $0x40] sm:$0xff]
        %v290 = vld [vmem:[%s277 + $0x48] sm:$0xff]
        %v291 = vld [vmem:[%s277 + $0x50] sm:$0xff]
        %v292 = vld [vmem:[%s277 + $0x58] sm:$0xff]
        %v293 = vld [vmem:[%s277 + $0x60] sm:$0xff]
        %v294 = vld [vmem:[%s277 + $0x68] sm:$0xff]
        %v295 = vld [vmem:[%s277 + $0x70] sm:$0xff]
        %v296 = vld [vmem:[%s277 + $0x78] sm:$0xff]
        %v297 = vld [vmem:[%s277 + $0x80] sm:$0xff]
        %v298 = vld [vmem:[%s277 + $0x88] sm:$0xff]
        %v299 = vld [vmem:[%s277 + $0x90] sm:$0xff]
        %v300 = vld [vmem:[%s277 + $0x98] sm:$0xff]
        %v301 = vpack.c.bf16 %v282, %v281
        %v302 = vpack.c.bf16 %v284, %v283
        %v303 = vpack.c.bf16 %v286, %v285
        %v304 = vpack.c.bf16 %v288, %v287
        %v305 = vpack.c.bf16 %v290, %v289
        %v306 = vpack.c.bf16 %v292, %v291
        %v307 = vpack.c.bf16 %v294, %v293
        %v308 = vpack.c.bf16 %v296, %v295
        %v309 = vpack.c.bf16 %v298, %v297
        %v310 = vpack.c.bf16 %v300, %v299
        %v311 = vld [vmem:[%s1] sm:$0xf]
        %v312 = vld [vmem:[%s1 + $0x4] sm:$0xf]
        %v313 = vld [vmem:[%s1 + $0x8] sm:$0xf]
        %v314 = vld [vmem:[%s1 + $0xc] sm:$0xf]
        %v315 = vld [vmem:[%s2] sm:$0x1]
        %v317 = vlaneseq
        %v318 = vshrl.u32 %v317, 7
        %v319 = vsub.s32 0, %v318
        %v320 = vrot.slane %v315, %v319
        %v326 = vunpack.c.l.b16 %v311
        %v327 = vunpack.c.l.b16 %v312
        %v328 = vunpack.c.l.b16 %v313
        %v329 = vunpack.c.l.b16 %v314
        %v330 = vpack.c.b16 %v327, %v326
        %v331 = vpack.c.b16 %v329, %v328
        %vm334 = vcmask 261120
        %v336 = vsel %vm334, %v301, 0
        %v339 = vsel %vm334, %v302, 0
        %v342 = vsel %vm334, %v303, 0
        %v345 = vsel %vm334, %v304, 0
        %v348 = vsel %vm334, %v305, 0
        %v351 = vsel %vm334, %v306, 0
        %v354 = vsel %vm334, %v307, 0
        %v357 = vsel %vm334, %v308, 0
        %v360 = vsel %vm334, %v309, 0
        %v363 = vsel %vm334, %v310, 0
        %365 = vmatprep.subr.bf16.mxu0 0
        %366 = vmatpush1.bf16.msra.mxu0 0
        %367 = vmatprep.subr.bf16.mxu0 0
        %368 = vmatpush1.bf16.msra.mxu0 0
        %369 = vmatprep.subr.bf16.mxu0 0
        %370 = vmatpush1.bf16.msra.mxu0 0
        %371 = vmatprep.subr.bf16.mxu0 0
        %372 = vmatpush1.bf16.msra.mxu0 0
        %373 = vmatprep.subr.bf16.mxu0 0
        %374 = vmatpush1.bf16.msra.mxu0 0
        %375 = vmatprep.subr.bf16.mxu0 0
        %376 = vmatpush1.bf16.msra.mxu0 0
        %377 = vmatprep.subr.bf16.mxu0 0
        %378 = vmatpush1.bf16.msra.mxu0 %v331
        %379 = vmatprep.subr.bf16.mxu0 0
        %380 = vmatpush1.bf16.msra.mxu0 %v330
        %381 = vmatprep.subr.bf16.mxu0 0
        %382 = vmatpush2.bf16.msra.mxu0 0
        %383 = vmatprep.subr.bf16.mxu0 0
        %384 = vmatpush2.bf16.msra.mxu0 0
        %385 = vmatprep.subr.bf16.mxu0 0
        %386 = vmatpush2.bf16.msra.mxu0 0
        %387 = vmatprep.subr.bf16.mxu0 0
        %388 = vmatpush2.bf16.msra.mxu0 0
        %389 = vmatprep.subr.bf16.mxu0 0
        %390 = vmatpush2.bf16.msra.mxu0 0
        %391 = vmatprep.subr.bf16.mxu0 0
        %392 = vmatpush2.bf16.msra.mxu0 0
        %393 = vmatprep.subr.bf16.mxu0 0
        %394 = vmatpush2.bf16.msra.mxu0 0
        %395 = vmatprep.subr.bf16.mxu0 0
        %396 = vmatpush2.bf16.msra.mxu0 0
        %397 = vmatprep.mubr.bf16.mxu0 0
        %398 = vmatmul.mubr.bf16.gmra.mxu0 %v336
        %v399 = vpop.f32.mrf.mxu0
        %v400 = vadd.f32 %v320, %v399
        %v401 = vpop.f32.mrf.mxu0
        %v402 = vpop.f32.mrf.mxu0
        %v403 = vadd.f32 %v320, %v402
        %v404 = vpop.f32.mrf.mxu0
        %405 = vmatprep.mubr.bf16.mxu0 0
        %406 = vmatmul.mubr.bf16.gmra.mxu0 %v339
        %v407 = vpop.f32.mrf.mxu0
        %v408 = vadd.f32 %v320, %v407
        %v409 = vpop.f32.mrf.mxu0
        %v410 = vpop.f32.mrf.mxu0
        %v411 = vadd.f32 %v320, %v410
        %v412 = vpop.f32.mrf.mxu0
        %413 = vmatprep.mubr.bf16.mxu0 0
        %414 = vmatmul.mubr.bf16.gmra.mxu0 %v342
        %v415 = vpop.f32.mrf.mxu0
        %v416 = vadd.f32 %v320, %v415
        %v417 = vpop.f32.mrf.mxu0
        %v418 = vpop.f32.mrf.mxu0
        %v419 = vadd.f32 %v320, %v418
        %v420 = vpop.f32.mrf.mxu0
        %421 = vmatprep.mubr.bf16.mxu0 0
        %422 = vmatmul.mubr.bf16.gmra.mxu0 %v345
        %v423 = vpop.f32.mrf.mxu0
        %v424 = vadd.f32 %v320, %v423
        %v425 = vpop.f32.mrf.mxu0
        %v426 = vpop.f32.mrf.mxu0
        %v427 = vadd.f32 %v320, %v426
        %v428 = vpop.f32.mrf.mxu0
        %429 = vmatprep.mubr.bf16.mxu0 0
        %430 = vmatmul.mubr.bf16.gmra.mxu0 %v348
        %v431 = vpop.f32.mrf.mxu0
        %v432 = vadd.f32 %v320, %v431
        %v433 = vpop.f32.mrf.mxu0
        %v434 = vpop.f32.mrf.mxu0
        %v435 = vadd.f32 %v320, %v434
        %v436 = vpop.f32.mrf.mxu0
        %437 = vmatprep.mubr.bf16.mxu0 0
        %438 = vmatmul.mubr.bf16.gmra.mxu0 %v351
        %v439 = vpop.f32.mrf.mxu0
        %v440 = vadd.f32 %v320, %v439
        %v441 = vpop.f32.mrf.mxu0
        %v442 = vpop.f32.mrf.mxu0
        %v443 = vadd.f32 %v320, %v442
        %v444 = vpop.f32.mrf.mxu0
        %445 = vmatprep.mubr.bf16.mxu0 0
        %446 = vmatmul.mubr.bf16.gmra.mxu0 %v354
        %v447 = vpop.f32.mrf.mxu0
        %v448 = vadd.f32 %v320, %v447
        %v449 = vpop.f32.mrf.mxu0
        %v450 = vpop.f32.mrf.mxu0
        %v451 = vadd.f32 %v320, %v450
        %v452 = vpop.f32.mrf.mxu0
        %453 = vmatprep.mubr.bf16.mxu0 0
        %454 = vmatmul.mubr.bf16.gmra.mxu0 %v357
        %v455 = vpop.f32.mrf.mxu0
        %v456 = vadd.f32 %v320, %v455
        %v457 = vpop.f32.mrf.mxu0
        %v458 = vpop.f32.mrf.mxu0
        %v459 = vadd.f32 %v320, %v458
        %v460 = vpop.f32.mrf.mxu0
        %461 = vmatprep.mubr.bf16.mxu0 0
        %462 = vmatmul.mubr.bf16.gmra.mxu0 %v360
        %v463 = vpop.f32.mrf.mxu0
        %v464 = vadd.f32 %v320, %v463
        %v465 = vpop.f32.mrf.mxu0
        %v466 = vpop.f32.mrf.mxu0
        %v467 = vadd.f32 %v320, %v466
        %v468 = vpop.f32.mrf.mxu0
        %469 = vmatprep.mubr.bf16.mxu0 0
        %470 = vmatmul.mubr.bf16.gmra.mxu0 %v363
        %v471 = vpop.f32.mrf.mxu0
        %v472 = vadd.f32 %v320, %v471
        %v473 = vpop.f32.mrf.mxu0
        %v474 = vpop.f32.mrf.mxu0
        %v475 = vadd.f32 %v320, %v474
        %v476 = vpop.f32.mrf.mxu0
        %477 = vdwg.mxu0
        %v478 = vmax.f32 %v400, 0.0
        %v479 = vmax.f32 %v403, 0.0
        %v480 = vmax.f32 %v408, 0.0
        %v481 = vmax.f32 %v411, 0.0
        %v482 = vmax.f32 %v416, 0.0
        %v483 = vmax.f32 %v419, 0.0
        %v484 = vmax.f32 %v424, 0.0
        %v485 = vmax.f32 %v427, 0.0
        %v486 = vmax.f32 %v432, 0.0
        %v487 = vmax.f32 %v435, 0.0
        %v488 = vmax.f32 %v440, 0.0
        %v489 = vmax.f32 %v443, 0.0
        %v490 = vmax.f32 %v448, 0.0
        %v491 = vmax.f32 %v451, 0.0
        %v492 = vmax.f32 %v456, 0.0
        %v493 = vmax.f32 %v459, 0.0
        %v494 = vmax.f32 %v464, 0.0
        %v495 = vmax.f32 %v467, 0.0
        %v496 = vmax.f32 %v472, 0.0
        %v497 = vmax.f32 %v475, 0.0
        %v498 = vpack.c.bf16 %v479, %v478
        %v499 = vpack.c.bf16 %v481, %v480
        %v500 = vpack.c.bf16 %v483, %v482
        %v501 = vpack.c.bf16 %v485, %v484
        %v502 = vpack.c.bf16 %v487, %v486
        %v503 = vpack.c.bf16 %v489, %v488
        %v504 = vpack.c.bf16 %v491, %v490
        %v505 = vpack.c.bf16 %v493, %v492
        %v506 = vpack.c.bf16 %v495, %v494
        %v507 = vpack.c.bf16 %v497, %v496
        %v508 = vld [vmem:[%s3] sm:$0xf]
        %v509 = vld [vmem:[%s3 + $0x4] sm:$0xf]
        %v510 = vld [vmem:[%s3 + $0x8] sm:$0xf]
        %v511 = vld [vmem:[%s3 + $0xc] sm:$0xf]
        %v512 = vld [vmem:[%s3 + $0x10] sm:$0xf]
        %v513 = vld [vmem:[%s3 + $0x14] sm:$0xf]
        %v514 = vld [vmem:[%s3 + $0x18] sm:$0xf]
        %v515 = vld [vmem:[%s3 + $0x1c] sm:$0xf]
        %v516 = vld [vmem:[%s3 + $0x20] sm:$0xf]
        %v517 = vld [vmem:[%s3 + $0x24] sm:$0xf]
        %v518 = vld [vmem:[%s3 + $0x28] sm:$0xf]
        %v519 = vld [vmem:[%s3 + $0x2c] sm:$0xf]
        %v520 = vld [vmem:[%s3 + $0x30] sm:$0xf]
        %v521 = vld [vmem:[%s3 + $0x34] sm:$0xf]
        %v522 = vld [vmem:[%s3 + $0x38] sm:$0xf]
        %v523 = vld [vmem:[%s3 + $0x3c] sm:$0xf]
        %v524 = vld [vmem:[%s4] sm:$0x1]
        %v526 = vlaneseq
        %v527 = vshrl.u32 %v526, 7
        %v528 = vsub.s32 0, %v527
        %v529 = vrot.slane %v524, %v528
        %v547 = vunpack.c.l.b16 %v508
        %v548 = vunpack.c.l.b16 %v509
        %v549 = vunpack.c.l.b16 %v510
        %v550 = vunpack.c.l.b16 %v511
        %v551 = vunpack.c.l.b16 %v512
        %v552 = vunpack.c.l.b16 %v513
        %v553 = vunpack.c.l.b16 %v514
        %v554 = vunpack.c.l.b16 %v515
        %v555 = vunpack.c.l.b16 %v516
        %v556 = vunpack.c.l.b16 %v517
        %v557 = vunpack.c.l.b16 %v518
        %v558 = vunpack.c.l.b16 %v519
        %v559 = vunpack.c.l.b16 %v520
        %v560 = vunpack.c.l.b16 %v521
        %v561 = vunpack.c.l.b16 %v522
        %v562 = vunpack.c.l.b16 %v523
        %v563 = vpack.c.b16 %v548, %v547
        %v564 = vpack.c.b16 %v550, %v549
        %v565 = vpack.c.b16 %v552, %v551
        %v566 = vpack.c.b16 %v554, %v553
        %v567 = vpack.c.b16 %v556, %v555
        %v568 = vpack.c.b16 %v558, %v557
        %v569 = vpack.c.b16 %v560, %v559
        %v570 = vpack.c.b16 %v562, %v561
        %579 = vmatprep.subr.bf16.mxu0 0
        %580 = vmatpush1.bf16.msra.mxu0 %v570
        %581 = vmatprep.subr.bf16.mxu0 0
        %582 = vmatpush1.bf16.msra.mxu0 %v569
        %583 = vmatprep.subr.bf16.mxu0 0
        %584 = vmatpush1.bf16.msra.mxu0 %v568
        %585 = vmatprep.subr.bf16.mxu0 0
        %586 = vmatpush1.bf16.msra.mxu0 %v567
        %587 = vmatprep.subr.bf16.mxu0 0
        %588 = vmatpush1.bf16.msra.mxu0 %v566
        %589 = vmatprep.subr.bf16.mxu0 0
        %590 = vmatpush1.bf16.msra.mxu0 %v565
        %591 = vmatprep.subr.bf16.mxu0 0
        %592 = vmatpush1.bf16.msra.mxu0 %v564
        %593 = vmatprep.subr.bf16.mxu0 0
        %594 = vmatpush1.bf16.msra.mxu0 %v563
        %595 = vmatprep.subr.bf16.mxu0 0
        %596 = vmatpush2.bf16.msra.mxu0 0
        %597 = vmatprep.subr.bf16.mxu0 0
        %598 = vmatpush2.bf16.msra.mxu0 0
        %599 = vmatprep.subr.bf16.mxu0 0
        %600 = vmatpush2.bf16.msra.mxu0 0
        %601 = vmatprep.subr.bf16.mxu0 0
        %602 = vmatpush2.bf16.msra.mxu0 0
        %603 = vmatprep.subr.bf16.mxu0 0
        %604 = vmatpush2.bf16.msra.mxu0 0
        %605 = vmatprep.subr.bf16.mxu0 0
        %606 = vmatpush2.bf16.msra.mxu0 0
        %607 = vmatprep.subr.bf16.mxu0 0
        %608 = vmatpush2.bf16.msra.mxu0 0
        %609 = vmatprep.subr.bf16.mxu0 0
        %610 = vmatpush2.bf16.msra.mxu0 0
        %611 = vmatprep.mubr.bf16.mxu0 0
        %612 = vmatmul.mubr.bf16.gmra.mxu0 %v498
        %v613 = vpop.f32.mrf.mxu0
        %v614 = vadd.f32 %v529, %v613
        %v615 = vpop.f32.mrf.mxu0
        %v616 = vpop.f32.mrf.mxu0
        %v617 = vadd.f32 %v529, %v616
        %v618 = vpop.f32.mrf.mxu0
        %619 = vmatprep.mubr.bf16.mxu0 0
        %620 = vmatmul.mubr.bf16.gmra.mxu0 %v499
        %v621 = vpop.f32.mrf.mxu0
        %v622 = vadd.f32 %v529, %v621
        %v623 = vpop.f32.mrf.mxu0
        %v624 = vpop.f32.mrf.mxu0
        %v625 = vadd.f32 %v529, %v624
        %v626 = vpop.f32.mrf.mxu0
        %627 = vmatprep.mubr.bf16.mxu0 0
        %628 = vmatmul.mubr.bf16.gmra.mxu0 %v500
        %v629 = vpop.f32.mrf.mxu0
        %v630 = vadd.f32 %v529, %v629
        %v631 = vpop.f32.mrf.mxu0
        %v632 = vpop.f32.mrf.mxu0
        %v633 = vadd.f32 %v529, %v632
        %v634 = vpop.f32.mrf.mxu0
        %635 = vmatprep.mubr.bf16.mxu0 0
        %636 = vmatmul.mubr.bf16.gmra.mxu0 %v501
        %v637 = vpop.f32.mrf.mxu0
        %v638 = vadd.f32 %v529, %v637
        %v639 = vpop.f32.mrf.mxu0
        %v640 = vpop.f32.mrf.mxu0
        %v641 = vadd.f32 %v529, %v640
        %v642 = vpop.f32.mrf.mxu0
        %643 = vmatprep.mubr.bf16.mxu0 0
        %644 = vmatmul.mubr.bf16.gmra.mxu0 %v502
        %v645 = vpop.f32.mrf.mxu0
        %v646 = vadd.f32 %v529, %v645
        %v647 = vpop.f32.mrf.mxu0
        %v648 = vpop.f32.mrf.mxu0
        %v649 = vadd.f32 %v529, %v648
        %v650 = vpop.f32.mrf.mxu0
        %651 = vmatprep.mubr.bf16.mxu0 0
        %652 = vmatmul.mubr.bf16.gmra.mxu0 %v503
        %v653 = vpop.f32.mrf.mxu0
        %v654 = vadd.f32 %v529, %v653
        %v655 = vpop.f32.mrf.mxu0
        %v656 = vpop.f32.mrf.mxu0
        %v657 = vadd.f32 %v529, %v656
        %v658 = vpop.f32.mrf.mxu0
        %659 = vmatprep.mubr.bf16.mxu0 0
        %660 = vmatmul.mubr.bf16.gmra.mxu0 %v504
        %v661 = vpop.f32.mrf.mxu0
        %v662 = vadd.f32 %v529, %v661
        %v663 = vpop.f32.mrf.mxu0
        %v664 = vpop.f32.mrf.mxu0
        %v665 = vadd.f32 %v529, %v664
        %v666 = vpop.f32.mrf.mxu0
        %667 = vmatprep.mubr.bf16.mxu0 0
        %668 = vmatmul.mubr.bf16.gmra.mxu0 %v505
        %v669 = vpop.f32.mrf.mxu0
        %v670 = vadd.f32 %v529, %v669
        %v671 = vpop.f32.mrf.mxu0
        %v672 = vpop.f32.mrf.mxu0
        %v673 = vadd.f32 %v529, %v672
        %v674 = vpop.f32.mrf.mxu0
        %675 = vmatprep.mubr.bf16.mxu0 0
        %676 = vmatmul.mubr.bf16.gmra.mxu0 %v506
        %v677 = vpop.f32.mrf.mxu0
        %v678 = vadd.f32 %v529, %v677
        %v679 = vpop.f32.mrf.mxu0
        %v680 = vpop.f32.mrf.mxu0
        %v681 = vadd.f32 %v529, %v680
        %v682 = vpop.f32.mrf.mxu0
        %683 = vmatprep.mubr.bf16.mxu0 0
        %684 = vmatmul.mubr.bf16.gmra.mxu0 %v507
        %v685 = vpop.f32.mrf.mxu0
        %v686 = vadd.f32 %v529, %v685
        %v687 = vpop.f32.mrf.mxu0
        %v688 = vpop.f32.mrf.mxu0
        %v689 = vadd.f32 %v529, %v688
        %v690 = vpop.f32.mrf.mxu0
        %691 = vdwg.mxu0
        %v692 = vmax.f32 %v614, 0.0
        %v693 = vmax.f32 %v617, 0.0
        %v694 = vmax.f32 %v622, 0.0
        %v695 = vmax.f32 %v625, 0.0
        %v696 = vmax.f32 %v630, 0.0
        %v697 = vmax.f32 %v633, 0.0
        %v698 = vmax.f32 %v638, 0.0
        %v699 = vmax.f32 %v641, 0.0
        %v700 = vmax.f32 %v646, 0.0
        %v701 = vmax.f32 %v649, 0.0
        %v702 = vmax.f32 %v654, 0.0
        %v703 = vmax.f32 %v657, 0.0
        %v704 = vmax.f32 %v662, 0.0
        %v705 = vmax.f32 %v665, 0.0
        %v706 = vmax.f32 %v670, 0.0
        %v707 = vmax.f32 %v673, 0.0
        %v708 = vmax.f32 %v678, 0.0
        %v709 = vmax.f32 %v681, 0.0
        %v710 = vmax.f32 %v686, 0.0
        %v711 = vmax.f32 %v689, 0.0
        %v712 = vpack.c.bf16 %v693, %v692
        %v713 = vpack.c.bf16 %v695, %v694
        %v714 = vpack.c.bf16 %v697, %v696
        %v715 = vpack.c.bf16 %v699, %v698
        %v716 = vpack.c.bf16 %v701, %v700
        %v717 = vpack.c.bf16 %v703, %v702
        %v718 = vpack.c.bf16 %v705, %v704
        %v719 = vpack.c.bf16 %v707, %v706
        %v720 = vpack.c.bf16 %v709, %v708
        %v721 = vpack.c.bf16 %v711, %v710
        %v722 = vld [vmem:[%s5] sm:$0xf]
        %v723 = vld [vmem:[%s5 + $0x4] sm:$0xf]
        %v724 = vld [vmem:[%s5 + $0x8] sm:$0xf]
        %v725 = vld [vmem:[%s5 + $0xc] sm:$0xf]
        %v726 = vld [vmem:[%s5 + $0x10] sm:$0xf]
        %v727 = vld [vmem:[%s5 + $0x14] sm:$0xf]
        %v728 = vld [vmem:[%s5 + $0x18] sm:$0xf]
        %v729 = vld [vmem:[%s5 + $0x1c] sm:$0xf]
        %v730 = vld [vmem:[%s5 + $0x20] sm:$0xf]
        %v731 = vld [vmem:[%s5 + $0x24] sm:$0xf]
        %v732 = vld [vmem:[%s5 + $0x28] sm:$0xf]
        %v733 = vld [vmem:[%s5 + $0x2c] sm:$0xf]
        %v734 = vld [vmem:[%s5 + $0x30] sm:$0xf]
        %v735 = vld [vmem:[%s5 + $0x34] sm:$0xf]
        %v736 = vld [vmem:[%s5 + $0x38] sm:$0xf]
        %v737 = vld [vmem:[%s5 + $0x3c] sm:$0xf]
        %v738 = vld [vmem:[%s6] sm:$0x1]
        %v740 = vlaneseq
        %v741 = vshrl.u32 %v740, 7
        %v742 = vsub.s32 0, %v741
        %v743 = vrot.slane %v738, %v742
        %v761 = vunpack.c.l.b16 %v722
        %v762 = vunpack.c.l.b16 %v723
        %v763 = vunpack.c.l.b16 %v724
        %v764 = vunpack.c.l.b16 %v725
        %v765 = vunpack.c.l.b16 %v726
        %v766 = vunpack.c.l.b16 %v727
        %v767 = vunpack.c.l.b16 %v728
        %v768 = vunpack.c.l.b16 %v729
        %v769 = vunpack.c.l.b16 %v730
        %v770 = vunpack.c.l.b16 %v731
        %v771 = vunpack.c.l.b16 %v732
        %v772 = vunpack.c.l.b16 %v733
        %v773 = vunpack.c.l.b16 %v734
        %v774 = vunpack.c.l.b16 %v735
        %v775 = vunpack.c.l.b16 %v736
        %v776 = vunpack.c.l.b16 %v737
        %v777 = vpack.c.b16 %v762, %v761
        %v778 = vpack.c.b16 %v764, %v763
        %v779 = vpack.c.b16 %v766, %v765
        %v780 = vpack.c.b16 %v768, %v767
        %v781 = vpack.c.b16 %v770, %v769
        %v782 = vpack.c.b16 %v772, %v771
        %v783 = vpack.c.b16 %v774, %v773
        %v784 = vpack.c.b16 %v776, %v775
        %793 = vmatprep.subr.bf16.mxu0 0
        %794 = vmatpush1.bf16.msra.mxu0 %v784
        %795 = vmatprep.subr.bf16.mxu0 0
        %796 = vmatpush1.bf16.msra.mxu0 %v783
        %797 = vmatprep.subr.bf16.mxu0 0
        %798 = vmatpush1.bf16.msra.mxu0 %v782
        %799 = vmatprep.subr.bf16.mxu0 0
        %800 = vmatpush1.bf16.msra.mxu0 %v781
        %801 = vmatprep.subr.bf16.mxu0 0
        %802 = vmatpush1.bf16.msra.mxu0 %v780
        %803 = vmatprep.subr.bf16.mxu0 0
        %804 = vmatpush1.bf16.msra.mxu0 %v779
        %805 = vmatprep.subr.bf16.mxu0 0
        %806 = vmatpush1.bf16.msra.mxu0 %v778
        %807 = vmatprep.subr.bf16.mxu0 0
        %808 = vmatpush1.bf16.msra.mxu0 %v777
        %809 = vmatprep.subr.bf16.mxu0 0
        %810 = vmatpush2.bf16.msra.mxu0 0
        %811 = vmatprep.subr.bf16.mxu0 0
        %812 = vmatpush2.bf16.msra.mxu0 0
        %813 = vmatprep.subr.bf16.mxu0 0
        %814 = vmatpush2.bf16.msra.mxu0 0
        %815 = vmatprep.subr.bf16.mxu0 0
        %816 = vmatpush2.bf16.msra.mxu0 0
        %817 = vmatprep.subr.bf16.mxu0 0
        %818 = vmatpush2.bf16.msra.mxu0 0
        %819 = vmatprep.subr.bf16.mxu0 0
        %820 = vmatpush2.bf16.msra.mxu0 0
        %821 = vmatprep.subr.bf16.mxu0 0
        %822 = vmatpush2.bf16.msra.mxu0 0
        %823 = vmatprep.subr.bf16.mxu0 0
        %824 = vmatpush2.bf16.msra.mxu0 0
        %825 = vmatprep.mubr.bf16.mxu0 0
        %826 = vmatmul.mubr.bf16.gmra.mxu0 %v712
        %v827 = vpop.f32.mrf.mxu0
        %v828 = vadd.f32 %v743, %v827
        %v829 = vpop.f32.mrf.mxu0
        %v830 = vpop.f32.mrf.mxu0
        %v831 = vadd.f32 %v743, %v830
        %v832 = vpop.f32.mrf.mxu0
        %833 = vmatprep.mubr.bf16.mxu0 0
        %834 = vmatmul.mubr.bf16.gmra.mxu0 %v713
        %v835 = vpop.f32.mrf.mxu0
        %v836 = vadd.f32 %v743, %v835
        %v837 = vpop.f32.mrf.mxu0
        %v838 = vpop.f32.mrf.mxu0
        %v839 = vadd.f32 %v743, %v838
        %v840 = vpop.f32.mrf.mxu0
        %841 = vmatprep.mubr.bf16.mxu0 0
        %842 = vmatmul.mubr.bf16.gmra.mxu0 %v714
        %v843 = vpop.f32.mrf.mxu0
        %v844 = vadd.f32 %v743, %v843
        %v845 = vpop.f32.mrf.mxu0
        %v846 = vpop.f32.mrf.mxu0
        %v847 = vadd.f32 %v743, %v846
        %v848 = vpop.f32.mrf.mxu0
        %849 = vmatprep.mubr.bf16.mxu0 0
        %850 = vmatmul.mubr.bf16.gmra.mxu0 %v715
        %v851 = vpop.f32.mrf.mxu0
        %v852 = vadd.f32 %v743, %v851
        %v853 = vpop.f32.mrf.mxu0
        %v854 = vpop.f32.mrf.mxu0
        %v855 = vadd.f32 %v743, %v854
        %v856 = vpop.f32.mrf.mxu0
        %857 = vmatprep.mubr.bf16.mxu0 0
        %858 = vmatmul.mubr.bf16.gmra.mxu0 %v716
        %v859 = vpop.f32.mrf.mxu0
        %v860 = vadd.f32 %v743, %v859
        %v861 = vpop.f32.mrf.mxu0
        %v862 = vpop.f32.mrf.mxu0
        %v863 = vadd.f32 %v743, %v862
        %v864 = vpop.f32.mrf.mxu0
        %865 = vmatprep.mubr.bf16.mxu0 0
        %866 = vmatmul.mubr.bf16.gmra.mxu0 %v717
        %v867 = vpop.f32.mrf.mxu0
        %v868 = vadd.f32 %v743, %v867
        %v869 = vpop.f32.mrf.mxu0
        %v870 = vpop.f32.mrf.mxu0
        %v871 = vadd.f32 %v743, %v870
        %v872 = vpop.f32.mrf.mxu0
        %873 = vmatprep.mubr.bf16.mxu0 0
        %874 = vmatmul.mubr.bf16.gmra.mxu0 %v718
        %v875 = vpop.f32.mrf.mxu0
        %v876 = vadd.f32 %v743, %v875
        %v877 = vpop.f32.mrf.mxu0
        %v878 = vpop.f32.mrf.mxu0
        %v879 = vadd.f32 %v743, %v878
        %v880 = vpop.f32.mrf.mxu0
        %881 = vmatprep.mubr.bf16.mxu0 0
        %882 = vmatmul.mubr.bf16.gmra.mxu0 %v719
        %v883 = vpop.f32.mrf.mxu0
        %v884 = vadd.f32 %v743, %v883
        %v885 = vpop.f32.mrf.mxu0
        %v886 = vpop.f32.mrf.mxu0
        %v887 = vadd.f32 %v743, %v886
        %v888 = vpop.f32.mrf.mxu0
        %889 = vmatprep.mubr.bf16.mxu0 0
        %890 = vmatmul.mubr.bf16.gmra.mxu0 %v720
        %v891 = vpop.f32.mrf.mxu0
        %v892 = vadd.f32 %v743, %v891
        %v893 = vpop.f32.mrf.mxu0
        %v894 = vpop.f32.mrf.mxu0
        %v895 = vadd.f32 %v743, %v894
        %v896 = vpop.f32.mrf.mxu0
        %897 = vmatprep.mubr.bf16.mxu0 0
        %898 = vmatmul.mubr.bf16.gmra.mxu0 %v721
        %v899 = vpop.f32.mrf.mxu0
        %v900 = vadd.f32 %v743, %v899
        %v901 = vpop.f32.mrf.mxu0
        %v902 = vpop.f32.mrf.mxu0
        %v903 = vadd.f32 %v743, %v902
        %v904 = vpop.f32.mrf.mxu0
        %905 = vdwg.mxu0
        %v906 = vpack.c.bf16 %v831, %v828
        %v907 = vpack.c.bf16 %v839, %v836
        %v908 = vpack.c.bf16 %v847, %v844
        %v909 = vpack.c.bf16 %v855, %v852
        %v910 = vpack.c.bf16 %v863, %v860
        %v911 = vpack.c.bf16 %v871, %v868
        %v912 = vpack.c.bf16 %v879, %v876
        %v913 = vpack.c.bf16 %v887, %v884
        %v914 = vpack.c.bf16 %v895, %v892
        %v915 = vpack.c.bf16 %v903, %v900
        %v926 = vunpack.c.l.b16 %v906
        %v927 = vunpack.c.h.b16 %v906
        %v928 = vunpack.c.l.b16 %v907
        %v929 = vunpack.c.h.b16 %v907
        %v930 = vunpack.c.l.b16 %v908
        %v931 = vunpack.c.h.b16 %v908
        %v932 = vunpack.c.l.b16 %v909
        %v933 = vunpack.c.h.b16 %v909
        %v934 = vunpack.c.l.b16 %v910
        %v935 = vunpack.c.h.b16 %v910
        %v936 = vunpack.c.l.b16 %v911
        %v937 = vunpack.c.h.b16 %v911
        %v938 = vunpack.c.l.b16 %v912
        %v939 = vunpack.c.h.b16 %v912
        %v940 = vunpack.c.l.b16 %v913
        %v941 = vunpack.c.h.b16 %v913
        %v942 = vunpack.c.l.b16 %v914
        %v943 = vunpack.c.h.b16 %v914
        %v944 = vunpack.c.l.b16 %v915
        %v945 = vunpack.c.h.b16 %v915
        %v946 = vpack.c.b16 %v926, %v926
        %v947 = vpack.c.b16 %v927, %v927
        %v948 = vpack.c.b16 %v928, %v928
        %v949 = vpack.c.b16 %v929, %v929
        %v950 = vpack.c.b16 %v930, %v930
        %v951 = vpack.c.b16 %v931, %v931
        %v952 = vpack.c.b16 %v932, %v932
        %v953 = vpack.c.b16 %v933, %v933
        %v954 = vpack.c.b16 %v934, %v934
        %v955 = vpack.c.b16 %v935, %v935
        %v956 = vpack.c.b16 %v936, %v936
        %v957 = vpack.c.b16 %v937, %v937
        %v958 = vpack.c.b16 %v938, %v938
        %v959 = vpack.c.b16 %v939, %v939
        %v960 = vpack.c.b16 %v940, %v940
        %v961 = vpack.c.b16 %v941, %v941
        %v962 = vpack.c.b16 %v942, %v942
        %v963 = vpack.c.b16 %v943, %v943
        %v964 = vpack.c.b16 %v944, %v944
        %v965 = vpack.c.b16 %v945, %v945
        %986 = vst [vmem:[%s272] sm:$0xf] %v946
        %987 = vst [vmem:[%s272 + $0x4] sm:$0xf] %v947
        %988 = vst [vmem:[%s272 + $0x8] sm:$0xf] %v948
        %989 = vst [vmem:[%s272 + $0xc] sm:$0xf] %v949
        %990 = vst [vmem:[%s272 + $0x10] sm:$0xf] %v950
        %991 = vst [vmem:[%s272 + $0x14] sm:$0xf] %v951
        %992 = vst [vmem:[%s272 + $0x18] sm:$0xf] %v952
        %993 = vst [vmem:[%s272 + $0x1c] sm:$0xf] %v953
        %994 = vst [vmem:[%s272 + $0x20] sm:$0xf] %v954
        %995 = vst [vmem:[%s272 + $0x24] sm:$0xf] %v955
        %996 = vst [vmem:[%s272 + $0x28] sm:$0xf] %v956
        %997 = vst [vmem:[%s272 + $0x2c] sm:$0xf] %v957
        %998 = vst [vmem:[%s272 + $0x30] sm:$0xf] %v958
        %999 = vst [vmem:[%s272 + $0x34] sm:$0xf] %v959
        %1000 = vst [vmem:[%s272 + $0x38] sm:$0xf] %v960
        %1001 = vst [vmem:[%s272 + $0x3c] sm:$0xf] %v961
        %1002 = vst [vmem:[%s272 + $0x40] sm:$0xf] %v962
        %1003 = vst [vmem:[%s272 + $0x44] sm:$0xf] %v963
        %1004 = vst [vmem:[%s272 + $0x48] sm:$0xf] %v964
        %1005 = vst [vmem:[%s272 + $0x4c] sm:$0xf] %v965
        %s1006 = sand.u32 %s181, 1
        %s1007 = scalar_lea.sflag [#allocation3], %s1006
        %s1008 = sand.u32 %s181, 1
        %s1009 = smul.addr %s1008, 80
        %s1010 = scalar_lea.vmem [#allocation2], %s1009
        // Predicated region
        $region49: #{tpu_custom_call.1} parent=47 // pred_check
          %p1011 = pneg %p191
        $region50: #{tpu_custom_call.1} parent=47 // pred_check_branch
          %1013 = sbr.rel (%p1011) target = $region52
        $region51: #{tpu_custom_call.1} parent=47 // pred_region
          %s1014 = smul.u32 20, %s21
          %s1016 = ssub.s32 1280, 1280
          %1017 = vsyncadd %s1007, %s1016
          %s1018 = smul.addr %s1014, 64
          %s1019 = scalar_lea.hbm %s7, %s1018
          %s1020 = sshll.u32 %s1010, 4
          %s1021 = int_to_ptr.vmem [resolvable:$true] %s1020
          %1026 = dma.vmem_to_hbm [thread:$0]  %s1021, 1280, %s1019, %s1007, 64, 64, 4
        $region52: #{tpu_custom_call.1} parent=47 // pred_fallthru
          _
      $region48: #{tpu_custom_call.1} parent=5 // pred_fallthru
        _
      %p1027 = scmp.le.s32.totalorder 2, %s16
      // Predicated region
      $region53: #{tpu_custom_call.1} parent=5 // pred_check
        %p1028 = pneg %p1027
      $region54: #{tpu_custom_call.1} parent=5 // pred_check_branch
        %1030 = sbr.rel (%p1028) target = $region56
      $region55: #{tpu_custom_call.1} parent=5 // pred_region
        %s1031 = ssub.s32 %s16, 2
        // Predicated region
        $region57: #{tpu_custom_call.1} parent=55 // pred_check
          %p1032 = pneg %p197
        $region58: #{tpu_custom_call.1} parent=55 // pred_check_branch
          %1034 = sbr.rel (%p1032) target = $region60
        $region59: #{tpu_custom_call.1} parent=55 // pred_region
          %s1035 = sand.u32 %s182, 1
          %s1036 = scalar_lea.sflag [#allocation3], %s1035
          %s1037 = sand.u32 %s182, 1
          %s1038 = smul.addr %s1037, 80
          %s1039 = scalar_lea.vmem [#allocation2], %s1038
          %1040 = dma.done %s1036, 1280
        $region60: #{tpu_custom_call.1} parent=55 // pred_fallthru
          _
      $region56: #{tpu_custom_call.1} parent=5 // pred_fallthru
        _
    $region6: #{tpu_custom_call.1} parent=1 // loop_footer
      %s20 = sadd.s32 1, %s16
    $region7: #{tpu_custom_call.1} parent=1 // loop_footer_branch
      %15 = sbr.rel target = $region3
    $region8: #{tpu_custom_call.1} parent=1 // loop_exit
      _
    %1041 = vsyncpa [#allocation3], 1
    %s1042 = scalar_lea.sflag [#allocation3], 1
    %1043 = vsyncpa %s1042, 1

</llo_original>
